<compile_context>
chip_gen: v5e
topology: v5e:2x2
jax: 0.10.0
libtpu: 0.0.40
codegen_flags: <defaults>
</compile_context>

<pallas_src>
import jax
import jax.numpy as jnp
from jax import lax
from jax.experimental import pallas as pl
from jax.experimental.pallas import tpu as pltpu


def _round_up(x, m):
    return (x + m - 1) // m * m


def dws_kernel(x_ref, dww_ref, b1_ref, pww_ref, b2_ref, o_ref, acc_ref):
    x = x_ref[0]                        # (H, W, Cin_p) f32
    H, W, C = x.shape
    dww = dww_ref[...]                  # (3, 3, Cin_p); BN scale already folded in

    # W-shifted copies (sublane axis) via XLU rolls; zero the wrapped column so
    # the shift behaves like zero padding.
    w_idx = lax.broadcasted_iota(jnp.int32, (H, W, C), 1)
    x_l = jnp.where(w_idx == 0, 0.0, pltpu.roll(x, shift=1, axis=1))          # x[:, w-1, :]
    x_r = jnp.where(w_idx == W - 1, 0.0, pltpu.roll(x, shift=W - 1, axis=1))  # x[:, w+1, :]
    cols = (x_l, x, x_r)

    # Depthwise 3x3, padding=1.  Kernel row kh=1 initializes the accumulator;
    # rows kh=0 / kh=2 are added with a one-row shift via major-dim slices
    # (no sublane misalignment, no per-row masks).
    acc_ref[...] = cols[0] * dww[1, 0] + cols[1] * dww[1, 1] + cols[2] * dww[1, 2]
    top = cols[0] * dww[0, 0] + cols[1] * dww[0, 1] + cols[2] * dww[0, 2]
    acc_ref[1:, :, :] = acc_ref[1:, :, :] + top[: H - 1]
    bot = cols[0] * dww[2, 0] + cols[1] * dww[2, 1] + cols[2] * dww[2, 2]
    acc_ref[: H - 1, :, :] = acc_ref[: H - 1, :, :] + bot[1:]

    # Folded-BN bias + ReLU.
    y1 = jnp.maximum(acc_ref[...] + b1_ref[0], 0.0)

    # Pointwise 1x1 conv == channel matmul on the MXU (bf16 operands, f32 acc).
    y1 = y1.reshape(H * W, C).astype(jnp.bfloat16)
    y2 = jnp.dot(y1, pww_ref[...], preferred_element_type=jnp.float32)

    # Folded-BN bias + ReLU, lane-dense store.
    y2 = jnp.maximum(y2 + b2_ref[0], 0.0)
    o_ref[0] = y2.reshape(H, W, -1).astype(o_ref.dtype)


def dws_conv2d(x_nchw, p, eps=1e-5):
    N, Cin, H, W = x_nchw.shape
    Cout = p["pw_w"].shape[-1]
    Cin_p = _round_up(Cin, 128)
    Cout_p = _round_up(Cout, 128)

    # Fold BN (inference mode) into per-channel scale / bias, then fold the
    # scales straight into the conv weights (biases stay as in-kernel adds).
    s1 = p["bn1_gamma"] / jnp.sqrt(p["bn1_var"] + eps)
    b1 = (p["dw_b"] - p["bn1_mean"]) * s1 + p["bn1_beta"]
    s2 = p["bn2_gamma"] / jnp.sqrt(p["bn2_var"] + eps)
    b2 = (p["pw_b"] - p["bn2_mean"]) * s2 + p["bn2_beta"]

    dw_w = p["dw_w"] * s1                 # (3, 3, Cin)  BN1-scaled depthwise weights
    pw_w = p["pw_w"] * s2[None, :]        # (Cin, Cout)  BN2-scaled pointwise weights

    # Lane-dense channel padding (no-op when channels are already x128).
    dw_w = jnp.pad(dw_w, ((0, 0), (0, 0), (0, Cin_p - Cin)))
    b1 = jnp.pad(b1, (0, Cin_p - Cin)).reshape(1, Cin_p)
    pw_w = jnp.pad(pw_w, ((0, Cin_p - Cin), (0, Cout_p - Cout))).astype(jnp.bfloat16)
    b2 = jnp.pad(b2, (0, Cout_p - Cout)).reshape(1, Cout_p)

    # NCHW -> NHWC (channels on lanes).  No spatial pad: halo handled in-kernel.
    # TODO(synk): keep activations NHWC across layers to drop these transposes.
    x = jnp.transpose(x_nchw, (0, 2, 3, 1)).astype(jnp.float32)
    x = jnp.pad(x, ((0, 0), (0, 0), (0, 0), (0, Cin_p - Cin)))

    # Explicit VMEM budget: double-buffered in/out tiles + weights + scratch
    # accumulator + headroom for the shifted copies / spills.
    tile_in = H * W * Cin_p * 4
    tile_out = H * W * Cout_p * 4
    weights = (9 * Cin_p + Cin_p + Cout_p) * 4 + Cin_p * Cout_p * 2
    vmem_est = 2 * tile_in + 2 * tile_out + 2 * weights + tile_in + 6 * tile_in
    vmem_limit = int(min(max(vmem_est, 16 * 1024 * 1024), 64 * 1024 * 1024))

    out_nhwc = pl.pallas_call(
        dws_kernel,
        out_shape=jax.ShapeDtypeStruct((N, H, W, Cout_p), jnp.float32),
        grid=(N,),
        in_specs=[
            pl.BlockSpec((1, H, W, Cin_p), lambda n: (n, 0, 0, 0)),
            pl.BlockSpec((3, 3, Cin_p), lambda n: (0, 0, 0)),
            pl.BlockSpec((1, Cin_p), lambda n: (0, 0)),
            pl.BlockSpec((Cin_p, Cout_p), lambda n: (0, 0)),
            pl.BlockSpec((1, Cout_p), lambda n: (0, 0)),
        ],
        out_specs=pl.BlockSpec((1, H, W, Cout_p), lambda n: (n, 0, 0, 0)),
        scratch_shapes=[pltpu.VMEM((H, W, Cin_p), jnp.float32)],
        compiler_params=pltpu.CompilerParams(
            dimension_semantics=("parallel",),
            vmem_limit_bytes=vmem_limit,
        ),
    )(x, dw_w, b1, pw_w, b2)

    out_nhwc = out_nhwc[..., :Cout]
    return jnp.transpose(out_nhwc, (0, 3, 1, 2))   # NHWC -> NCHW


def init_params(key, cin, cout):
    ks = jax.random.split(key, 10)
    return {
        # depthwise conv: PyTorch weight (cin, 1, 3, 3) stored here as (3, 3, cin)
        "dw_w": 0.1 * jax.random.normal(ks[0], (3, 3, cin), jnp.float32),
        "dw_b": 0.1 * jax.random.normal(ks[1], (cin,), jnp.float32),
        "bn1_gamma": 1.0 + 0.1 * jax.random.normal(ks[2], (cin,), jnp.float32),
        "bn1_beta": 0.1 * jax.random.normal(ks[3], (cin,), jnp.float32),
        "bn1_mean": 0.1 * jax.random.normal(ks[4], (cin,), jnp.float32),
        "bn1_var": 0.5 + jnp.abs(jax.random.normal(ks[5], (cin,), jnp.float32)),
        # pointwise conv: PyTorch weight (cout, cin, 1, 1) stored here as (cin, cout)
        "pw_w": 0.1 * jax.random.normal(ks[6], (cin, cout), jnp.float32),
        "pw_b": 0.1 * jax.random.normal(ks[7], (cout,), jnp.float32),
        "bn2_gamma": 1.0 + 0.1 * jax.random.normal(ks[8], (cout,), jnp.float32),
        "bn2_beta": 0.1 * jax.random.normal(ks[9], (cout,), jnp.float32),
        "bn2_mean": jnp.zeros((cout,), jnp.float32),
        "bn2_var": jnp.ones((cout,), jnp.float32),
    }


def reference(x_nchw, p, eps=1e-5):
    # Plain-JAX reference (same semantics) used only for a correctness check.
    x = jnp.transpose(x_nchw, (0, 2, 3, 1)).astype(jnp.float32)
    N, H, W, Cin = x.shape
    xp = jnp.pad(x, ((0, 0), (1, 1), (1, 1), (0, 0)))
    acc = jnp.zeros_like(x)
    for dh in range(3):
        for dw in range(3):
            acc = acc + xp[:, dh:dh + H, dw:dw + W, :] * p["dw_w"][dh, dw]
    acc = acc + p["dw_b"]
    y1 = (acc - p["bn1_mean"]) / jnp.sqrt(p["bn1_var"] + eps) * p["bn1_gamma"] + p["bn1_beta"]
    y1 = jnp.maximum(y1, 0.0)
    y2 = jnp.einsum("nhwc,cd->nhwd", y1, p["pw_w"]) + p["pw_b"]
    y2 = (y2 - p["bn2_mean"]) / jnp.sqrt(p["bn2_var"] + eps) * p["bn2_gamma"] + p["bn2_beta"]
    y2 = jnp.maximum(y2, 0.0)
    return jnp.transpose(y2, (0, 3, 1, 2))


if __name__ == "__main__":
    key = jax.random.PRNGKey(0)
    kx, kp = jax.random.split(key)

    N, Cin, H, W = 2, 4, 16, 16
    Cout = 8

    x = jax.random.normal(kx, (N, Cin, H, W), jnp.float32)
    params = init_params(kp, Cin, Cout)

    out = dws_conv2d(x, params)
    out = jax.block_until_ready(out)

    ref = reference(x, params)
    assert out.shape == (N, Cout, H, W)
    # bf16 operands on the pointwise matmul -> slightly looser tolerance.
    assert jnp.allclose(out, ref, atol=3e-2, rtol=3e-2), float(jnp.max(jnp.abs(out - ref)))

    print("KERNEL_OK")
</pallas_src>

<mosaic_0001>
module attributes {stable_mosaic.version = 11 : i64} {
  func.func @dws_kernel(%arg0: i32, %arg1: memref<1x16x16x128xf32, #tpu.memory_space<vmem>>, %arg2: memref<3x3x128xf32, #tpu.memory_space<vmem>>, %arg3: memref<1x128xf32, #tpu.memory_space<vmem>>, %arg4: memref<128x128xbf16, #tpu.memory_space<vmem>>, %arg5: memref<1x128xf32, #tpu.memory_space<vmem>>, %arg6: memref<1x16x16x128xf32, #tpu.memory_space<vmem>>, %arg7: memref<16x16x128xf32, #tpu.memory_space<vmem>>) attributes {dimension_semantics = [#tpu.dimension_semantics<parallel>], iteration_bounds = array<i64: 2>, scalar_prefetch = 0 : i64, scratch_operands = 1 : i64, tpu.core_type = #tpu.core_type<tc>, window_params = [{transform_indices = @transform_0, window_bounds = array<i64: 1, 16, 16, 128>}, {pipeline_mode = #tpu.pipeline_mode<synchronous>, transform_indices = @transform_1, window_bounds = array<i64: 3, 3, 128>}, {pipeline_mode = #tpu.pipeline_mode<synchronous>, transform_indices = @transform_2, window_bounds = array<i64: 1, 128>}, {pipeline_mode = #tpu.pipeline_mode<synchronous>, transform_indices = @transform_3, window_bounds = array<i64: 128, 128>}, {pipeline_mode = #tpu.pipeline_mode<synchronous>, transform_indices = @transform_4, window_bounds = array<i64: 1, 128>}, {transform_indices = @transform_5, window_bounds = array<i64: 1, 16, 16, 128>}]} {
    %c0 = arith.constant 0 : index
    %c0_0 = arith.constant 0 : index
    %c0_1 = arith.constant 0 : index
    %c0_2 = arith.constant 0 : index
    %0 = vector.load %arg1[%c0, %c0_0, %c0_1, %c0_2] : memref<1x16x16x128xf32, #tpu.memory_space<vmem>>, vector<1x16x16x128xf32>
    %1 = vector.shape_cast %0 : vector<1x16x16x128xf32> to vector<16x16x128xf32>
    %c0_3 = arith.constant 0 : index
    %c0_4 = arith.constant 0 : index
    %c0_5 = arith.constant 0 : index
    %2 = vector.load %arg2[%c0_3, %c0_4, %c0_5] : memref<3x3x128xf32, #tpu.memory_space<vmem>>, vector<3x3x128xf32>
    %3 = tpu.iota {dimensions = array<i32: 1>} : vector<16x16x128xi32>
    %c0_i32 = arith.constant 0 : i32
    %4 = vector.broadcast %c0_i32 : i32 to vector<16x16x128xi32>
    %5 = arith.cmpi eq, %3, %4 : vector<16x16x128xi32>
    %c1_i32 = arith.constant 1 : i32
    %6 = tpu.dynamic_rotate %1 by %c1_i32 dim 1 : vector<16x16x128xf32>, i32 -> vector<16x16x128xf32>
    %cst = arith.constant 0.000000e+00 : f32
    %7 = vector.broadcast %cst : f32 to vector<16x16x128xf32>
    %8 = arith.select %5, %7, %6 : vector<16x16x128xi1>, vector<16x16x128xf32>
    %c15_i32 = arith.constant 15 : i32
    %9 = vector.broadcast %c15_i32 : i32 to vector<16x16x128xi32>
    %10 = arith.cmpi eq, %3, %9 : vector<16x16x128xi32>
    %c15_i32_6 = arith.constant 15 : i32
    %11 = tpu.dynamic_rotate %1 by %c15_i32_6 dim 1 : vector<16x16x128xf32>, i32 -> vector<16x16x128xf32>
    %cst_7 = arith.constant 0.000000e+00 : f32
    %12 = vector.broadcast %cst_7 : f32 to vector<16x16x128xf32>
    %13 = arith.select %10, %12, %11 : vector<16x16x128xi1>, vector<16x16x128xf32>
    %14 = vector.extract_strided_slice %2 {offsets = [1, 0, 0], sizes = [1, 1, 128], strides = [1, 1, 1]} : vector<3x3x128xf32> to vector<1x1x128xf32>
    %15 = vector.shape_cast %14 : vector<1x1x128xf32> to vector<128xf32>
    %16 = vector.shape_cast %15 : vector<128xf32> to vector<1x1x128xf32>
    %17 = vector.broadcast %16 : vector<1x1x128xf32> to vector<16x16x128xf32>
    %18 = arith.mulf %8, %17 : vector<16x16x128xf32>
    %19 = vector.extract_strided_slice %2 {offsets = [1, 1, 0], sizes = [1, 1, 128], strides = [1, 1, 1]} : vector<3x3x128xf32> to vector<1x1x128xf32>
    %20 = vector.shape_cast %19 : vector<1x1x128xf32> to vector<128xf32>
    %21 = vector.shape_cast %20 : vector<128xf32> to vector<1x1x128xf32>
    %22 = vector.broadcast %21 : vector<1x1x128xf32> to vector<16x16x128xf32>
    %23 = arith.mulf %1, %22 : vector<16x16x128xf32>
    %24 = arith.addf %18, %23 : vector<16x16x128xf32>
    %25 = vector.extract_strided_slice %2 {offsets = [1, 2, 0], sizes = [1, 1, 128], strides = [1, 1, 1]} : vector<3x3x128xf32> to vector<1x1x128xf32>
    %26 = vector.shape_cast %25 : vector<1x1x128xf32> to vector<128xf32>
    %27 = vector.shape_cast %26 : vector<128xf32> to vector<1x1x128xf32>
    %28 = vector.broadcast %27 : vector<1x1x128xf32> to vector<16x16x128xf32>
    %29 = arith.mulf %13, %28 : vector<16x16x128xf32>
    %30 = arith.addf %24, %29 : vector<16x16x128xf32>
    %c0_8 = arith.constant 0 : index
    %c0_9 = arith.constant 0 : index
    %c0_10 = arith.constant 0 : index
    %31 = vector.load %arg7[%c0_8, %c0_9, %c0_10] : memref<16x16x128xf32, #tpu.memory_space<vmem>>, vector<16x16x128xf32>
    tpu.vector_store %arg7[%c0_8, %c0_9, %c0_10], %30 {strides = array<i32>} : memref<16x16x128xf32, #tpu.memory_space<vmem>>, vector<16x16x128xf32>,
    %32 = vector.extract_strided_slice %2 {offsets = [0, 0, 0], sizes = [1, 1, 128], strides = [1, 1, 1]} : vector<3x3x128xf32> to vector<1x1x128xf32>
    %33 = vector.shape_cast %32 : vector<1x1x128xf32> to vector<128xf32>
    %34 = vector.shape_cast %33 : vector<128xf32> to vector<1x1x128xf32>
    %35 = vector.broadcast %34 : vector<1x1x128xf32> to vector<16x16x128xf32>
    %36 = arith.mulf %8, %35 : vector<16x16x128xf32>
    %37 = vector.extract_strided_slice %2 {offsets = [0, 1, 0], sizes = [1, 1, 128], strides = [1, 1, 1]} : vector<3x3x128xf32> to vector<1x1x128xf32>
    %38 = vector.shape_cast %37 : vector<1x1x128xf32> to vector<128xf32>
    %39 = vector.shape_cast %38 : vector<128xf32> to vector<1x1x128xf32>
    %40 = vector.broadcast %39 : vector<1x1x128xf32> to vector<16x16x128xf32>
    %41 = arith.mulf %1, %40 : vector<16x16x128xf32>
    %42 = arith.addf %36, %41 : vector<16x16x128xf32>
    %43 = vector.extract_strided_slice %2 {offsets = [0, 2, 0], sizes = [1, 1, 128], strides = [1, 1, 1]} : vector<3x3x128xf32> to vector<1x1x128xf32>
    %44 = vector.shape_cast %43 : vector<1x1x128xf32> to vector<128xf32>
    %45 = vector.shape_cast %44 : vector<128xf32> to vector<1x1x128xf32>
    %46 = vector.broadcast %45 : vector<1x1x128xf32> to vector<16x16x128xf32>
    %47 = arith.mulf %13, %46 : vector<16x16x128xf32>
    %48 = arith.addf %42, %47 : vector<16x16x128xf32>
    %c1 = arith.constant 1 : index
    %c0_11 = arith.constant 0 : index
    %c0_12 = arith.constant 0 : index
    %49 = vector.load %arg7[%c1, %c0_11, %c0_12] : memref<16x16x128xf32, #tpu.memory_space<vmem>>, vector<15x16x128xf32>
    %50 = vector.extract_strided_slice %48 {offsets = [0, 0, 0], sizes = [15, 16, 128], strides = [1, 1, 1]} : vector<16x16x128xf32> to vector<15x16x128xf32>
    %51 = arith.addf %49, %50 : vector<15x16x128xf32>
    %c1_13 = arith.constant 1 : index
    %c0_14 = arith.constant 0 : index
    %c0_15 = arith.constant 0 : index
    %52 = vector.load %arg7[%c1_13, %c0_14, %c0_15] : memref<16x16x128xf32, #tpu.memory_space<vmem>>, vector<15x16x128xf32>
    tpu.vector_store %arg7[%c1_13, %c0_14, %c0_15], %51 {strides = array<i32>} : memref<16x16x128xf32, #tpu.memory_space<vmem>>, vector<15x16x128xf32>,
    %53 = vector.extract_strided_slice %2 {offsets = [2, 0, 0], sizes = [1, 1, 128], strides = [1, 1, 1]} : vector<3x3x128xf32> to vector<1x1x128xf32>
    %54 = vector.shape_cast %53 : vector<1x1x128xf32> to vector<128xf32>
    %55 = vector.shape_cast %54 : vector<128xf32> to vector<1x1x128xf32>
    %56 = vector.broadcast %55 : vector<1x1x128xf32> to vector<16x16x128xf32>
    %57 = arith.mulf %8, %56 : vector<16x16x128xf32>
    %58 = vector.extract_strided_slice %2 {offsets = [2, 1, 0], sizes = [1, 1, 128], strides = [1, 1, 1]} : vector<3x3x128xf32> to vector<1x1x128xf32>
    %59 = vector.shape_cast %58 : vector<1x1x128xf32> to vector<128xf32>
    %60 = vector.shape_cast %59 : vector<128xf32> to vector<1x1x128xf32>
    %61 = vector.broadcast %60 : vector<1x1x128xf32> to vector<16x16x128xf32>
    %62 = arith.mulf %1, %61 : vector<16x16x128xf32>
    %63 = arith.addf %57, %62 : vector<16x16x128xf32>
    %64 = vector.extract_strided_slice %2 {offsets = [2, 2, 0], sizes = [1, 1, 128], strides = [1, 1, 1]} : vector<3x3x128xf32> to vector<1x1x128xf32>
    %65 = vector.shape_cast %64 : vector<1x1x128xf32> to vector<128xf32>
    %66 = vector.shape_cast %65 : vector<128xf32> to vector<1x1x128xf32>
    %67 = vector.broadcast %66 : vector<1x1x128xf32> to vector<16x16x128xf32>
    %68 = arith.mulf %13, %67 : vector<16x16x128xf32>
    %69 = arith.addf %63, %68 : vector<16x16x128xf32>
    %c0_16 = arith.constant 0 : index
    %c0_17 = arith.constant 0 : index
    %c0_18 = arith.constant 0 : index
    %70 = vector.load %arg7[%c0_16, %c0_17, %c0_18] : memref<16x16x128xf32, #tpu.memory_space<vmem>>, vector<15x16x128xf32>
    %71 = vector.extract_strided_slice %69 {offsets = [1, 0, 0], sizes = [15, 16, 128], strides = [1, 1, 1]} : vector<16x16x128xf32> to vector<15x16x128xf32>
    %72 = arith.addf %70, %71 : vector<15x16x128xf32>
    %c0_19 = arith.constant 0 : index
    %c0_20 = arith.constant 0 : index
    %c0_21 = arith.constant 0 : index
    %73 = vector.load %arg7[%c0_19, %c0_20, %c0_21] : memref<16x16x128xf32, #tpu.memory_space<vmem>>, vector<15x16x128xf32>
    tpu.vector_store %arg7[%c0_19, %c0_20, %c0_21], %72 {strides = array<i32>} : memref<16x16x128xf32, #tpu.memory_space<vmem>>, vector<15x16x128xf32>,
    %c0_22 = arith.constant 0 : index
    %c0_23 = arith.constant 0 : index
    %c0_24 = arith.constant 0 : index
    %74 = vector.load %arg7[%c0_22, %c0_23, %c0_24] : memref<16x16x128xf32, #tpu.memory_space<vmem>>, vector<16x16x128xf32>
    %c0_25 = arith.constant 0 : index
    %c0_26 = arith.constant 0 : index
    %75 = vector.load %arg3[%c0_25, %c0_26] : memref<1x128xf32, #tpu.memory_space<vmem>>, vector<1x128xf32>
    %76 = vector.shape_cast %75 : vector<1x128xf32> to vector<128xf32>
    %77 = vector.shape_cast %76 : vector<128xf32> to vector<1x1x128xf32>
    %78 = vector.broadcast %77 : vector<1x1x128xf32> to vector<16x16x128xf32>
    %79 = arith.addf %74, %78 : vector<16x16x128xf32>
    %cst_27 = arith.constant 0.000000e+00 : f32
    %80 = vector.broadcast %cst_27 : f32 to vector<16x16x128xf32>
    %81 = arith.maximumf %79, %80 : vector<16x16x128xf32>
    %82 = vector.shape_cast %81 : vector<16x16x128xf32> to vector<256x128xf32>
    %83 = arith.truncf %82 : vector<256x128xf32> to vector<256x128xbf16>
    %c0_28 = arith.constant 0 : index
    %c0_29 = arith.constant 0 : index
    %84 = vector.load %arg4[%c0_28, %c0_29] : memref<128x128xbf16, #tpu.memory_space<vmem>>, vector<128x128xbf16>
    %cst_30 = arith.constant dense<0.000000e+00> : vector<256x128xf32>
    %85 = tpu.matmul %83, %84, %cst_30 {dimension_numbers = #tpu.dot_dimension_numbers<[1], [0], [0], [1], [0, 0, 1, 1], [], []>} : vector<256x128xbf16>, vector<128x128xbf16>, vector<256x128xf32> -> vector<256x128xf32>
    %c0_31 = arith.constant 0 : index
    %c0_32 = arith.constant 0 : index
    %86 = vector.load %arg5[%c0_31, %c0_32] : memref<1x128xf32, #tpu.memory_space<vmem>>, vector<1x128xf32>
    %87 = vector.shape_cast %86 : vector<1x128xf32> to vector<128xf32>
    %88 = vector.shape_cast %87 : vector<128xf32> to vector<1x128xf32>
    %89 = vector.broadcast %88 : vector<1x128xf32> to vector<256x128xf32>
    %90 = arith.addf %85, %89 : vector<256x128xf32>
    %cst_33 = arith.constant 0.000000e+00 : f32
    %91 = vector.broadcast %cst_33 : f32 to vector<256x128xf32>
    %92 = arith.maximumf %90, %91 : vector<256x128xf32>
    %93 = vector.shape_cast %92 : vector<256x128xf32> to vector<16x16x128xf32>
    %c0_34 = arith.constant 0 : index
    %c0_35 = arith.constant 0 : index
    %c0_36 = arith.constant 0 : index
    %c0_37 = arith.constant 0 : index
    %94 = vector.load %arg6[%c0_34, %c0_35, %c0_36, %c0_37] : memref<1x16x16x128xf32, #tpu.memory_space<vmem>>, vector<1x16x16x128xf32>
    %95 = vector.shape_cast %94 : vector<1x16x16x128xf32> to vector<16x16x128xf32>
    %96 = vector.shape_cast %93 : vector<16x16x128xf32> to vector<1x16x16x128xf32>
    tpu.vector_store %arg6[%c0_34, %c0_35, %c0_36, %c0_37], %96 {strides = array<i32>} : memref<1x16x16x128xf32, #tpu.memory_space<vmem>>, vector<1x16x16x128xf32>,
    return
  }
  func.func @transform_0(%arg0: i32) -> (i32, i32, i32, i32) {
    %c0_i32 = arith.constant 0 : i32
    %c0_i32_0 = arith.constant 0 : i32
    %c0_i32_1 = arith.constant 0 : i32
    %c0_i32_2 = arith.constant 0 : i32
    return %arg0, %c0_i32, %c0_i32_0, %c0_i32_1 : i32, i32, i32, i32
  }
  func.func @transform_1(%arg0: i32) -> (i32, i32, i32) {
    %c0_i32 = arith.constant 0 : i32
    %c0_i32_0 = arith.constant 0 : i32
    %c0_i32_1 = arith.constant 0 : i32
    %c0_i32_2 = arith.constant 0 : i32
    return %c0_i32, %c0_i32_0, %c0_i32_1 : i32, i32, i32
  }
  func.func @transform_2(%arg0: i32) -> (i32, i32) {
    %c0_i32 = arith.constant 0 : i32
    %c0_i32_0 = arith.constant 0 : i32
    %c0_i32_1 = arith.constant 0 : i32
    return %c0_i32, %c0_i32_0 : i32, i32
  }
  func.func @transform_3(%arg0: i32) -> (i32, i32) {
    %c0_i32 = arith.constant 0 : i32
    %c0_i32_0 = arith.constant 0 : i32
    %c0_i32_1 = arith.constant 0 : i32
    return %c0_i32, %c0_i32_0 : i32, i32
  }
  func.func @transform_4(%arg0: i32) -> (i32, i32) {
    %c0_i32 = arith.constant 0 : i32
    %c0_i32_0 = arith.constant 0 : i32
    %c0_i32_1 = arith.constant 0 : i32
    return %c0_i32, %c0_i32_0 : i32, i32
  }
  func.func @transform_5(%arg0: i32) -> (i32, i32, i32, i32) {
    %c0_i32 = arith.constant 0 : i32
    %c0_i32_0 = arith.constant 0 : i32
    %c0_i32_1 = arith.constant 0 : i32
    %c0_i32_2 = arith.constant 0 : i32
    return %arg0, %c0_i32, %c0_i32_0, %c0_i32_1 : i32, i32, i32, i32
  }
}

</mosaic_0001>

<llo_original>
// kernel: tpu_custom_call.1
$region0: #{tpu_custom_call.1}
  #allocation0 [shape = 'u32[]', space=smem, size = 0x4, offset = 0x4, fixed_abs, tag = 'smem constant byte address 0x4 - core index']
  #allocation1 [shape = 'u32[72,128]{1,0:T(1,128)}', space=vmem, size = 0x9000, scoped, tag = 'internal scratch']
  #allocation2 [shape = 'f32[16,16,128]{2,1,0:T(8,128)}', space=vmem, size = 0x20000, scoped, tag = 'scratch operand']
  %s0 = inlined_call_operand.hbm [shape: f32[2,16,16,128], index: 0, kind: input, shape index: {}]
  %s1 = inlined_call_operand.hbm [shape: f32[3,3,128], index: 1, kind: input, shape index: {}]
  %s2 = inlined_call_operand.vmem [shape: f32[1,128], index: 2, kind: input, shape index: {}]
  %s3 = inlined_call_operand.hbm [shape: bf16[128,128], index: 3, kind: input, shape index: {}]
  %s4 = inlined_call_operand.vmem [shape: f32[1,128], index: 4, kind: input, shape index: {}]
  %s5 = inlined_call_operand.hbm [shape: f32[2,16,16,128], index: 5, kind: output, shape index: {}]
  %s6 = sld [smem:[#allocation0]]
  $region65: #{tpu_custom_call.1} parent=0
    _
  %s8 = ssub.s32 1, %s6
  %s9 = scalar_select 0, %s8, %s6
  $region1: #{tpu_custom_call.1} parent=0
    #allocation3 [shape = 'u8[262144]{0}', space=vmem, size = 0x40000, scoped, tag = 'input window, operand 0']
    #allocation4 [shape = 's32[2]{0}', space=sflag, size = 0x8, scoped, tag = 'scoped memory for tpu_custom_call.1']
    #allocation5 [shape = 's32[2]{0}', space=sflag, size = 0x8, scoped, tag = 'scoped memory for tpu_custom_call.1']
    #allocation6 [shape = 'u8[6144]{0}', space=vmem, size = 0x1800, scoped, tag = 'input window, operand 1, single buffered']
    #allocation7 [shape = 's32[1]{0}', space=sflag, size = 0x4, scoped, tag = 'scoped memory for tpu_custom_call.1']
    #allocation8 [shape = 'u8[32768]{0}', space=vmem, size = 0x8000, scoped, tag = 'input window, operand 3, single buffered']
    #allocation9 [shape = 'u8[262144]{0}', space=vmem, size = 0x40000, scoped, tag = 'output window, operand 0']
    %10 = vsyncpa [#allocation4], 0
    %s11 = scalar_lea.sflag [#allocation4], 1
    %12 = vsyncpa %s11, 0
    %13 = vsyncpa [#allocation7], 0
    %14 = vsyncpa [#allocation5], 0
    %s15 = scalar_lea.sflag [#allocation5], 1
    %16 = vsyncpa %s15, 0
    loop: start=0, step=1, limit=4
    $region2: #{tpu_custom_call.1} parent=1 // loop_pre_header
      _
    $region3: #{tpu_custom_call.1} parent=1 // loop_header
      %s18 = sphi 0, %s22
      %p19 = scmp.ge.s32.totalorder %s18, 4
      %s28 = sphi 0, %s30
      %s31 = sphi 0, %s28
      %s32 = sphi 0, %s31
      %s48 = sphi 0, %s32
      %s52 = sphi 0, %s52
      %s54 = sphi 0, %s52
      %s55 = sphi 0, %s54
      %s69 = sphi 0, %s55
      %s73 = sphi 0, %s73
      %s75 = sphi 0, %s73
      %s76 = sphi 0, %s75
      %s90 = sphi 0, %s76
      %s94 = sphi 0, %s94
      %s96 = sphi 0, %s94
      %s97 = sphi 0, %s96
      %s111 = sphi 0, %s97
      %s115 = sphi 0, %s115
      %s117 = sphi 0, %s115
      %s118 = sphi 0, %s117
      %s132 = sphi 0, %s118
      %s138 = sphi 0, %s140
      %s141 = sphi 0, %s138
      %s142 = sphi 0, %s141
      %s158 = sphi 0, %s142
    $region4: #{tpu_custom_call.1} parent=1 // loop_header_branch
      %21 = sbr.rel (%p19) target = $region8
    $region5: #{tpu_custom_call.1} parent=1 // loop_body
      %s23 = ssub.s32 %s18, 1
      %s24 = ssub.s32 %s18, 2
      %s25 = sadd.s32 %s18, 1
      %s26 = ssub.s32 %s18, %s25
      %p27 = scmp.eq.s32.totalorder %s26, 0
      %s29 = sadd.s32 %s28, 1
      %s30 = scalar_select %p27, %s28, %s29
      %p33 = pneg %p27
      %p34 = scmp.eq.s32.totalorder %s18, 1
      %p35 = por %p33, %p34
      %p36 = scmp.ne.s32.totalorder %s28, %s31
      %p37 = scmp.eq.s32.totalorder %s18, 0
      %p38 = por %p36, %p37
      %p39 = scmp.ne.s32.totalorder %s28, %s31
      %p40 = scmp.eq.s32.totalorder %s23, 1
      %p41 = por %p39, %p40
      %p42 = scmp.ne.s32.totalorder %s31, %s32
      %p43 = scmp.eq.s32.totalorder %s23, 0
      %p44 = por %p42, %p43
      %p45 = scmp.ne.s32.totalorder %s31, %s32
      %p46 = scmp.eq.s32.totalorder %s24, 1
      %p47 = por %p45, %p46
      %p49 = scmp.ne.s32.totalorder %s32, %s48
      %p50 = scmp.eq.s32.totalorder %s24, 0
      %p51 = por %p49, %p50
      %s53 = sadd.s32 %s52, 1
      %p56 = scmp.eq.s32.totalorder %s18, 1
      %p57 = scmp.ne.s32.totalorder %s52, %s54
      %p58 = scmp.eq.s32.totalorder %s18, 0
      %p59 = por %p57, %p58
      %p60 = scmp.ne.s32.totalorder %s52, %s54
      %p61 = scmp.eq.s32.totalorder %s23, 1
      %p62 = por %p60, %p61
      %p63 = scmp.ne.s32.totalorder %s54, %s55
      %p64 = scmp.eq.s32.totalorder %s23, 0
      %p65 = por %p63, %p64
      %p66 = scmp.ne.s32.totalorder %s54, %s55
      %p67 = scmp.eq.s32.totalorder %s24, 1
      %p68 = por %p66, %p67
      %p70 = scmp.ne.s32.totalorder %s55, %s69
      %p71 = scmp.eq.s32.totalorder %s24, 0
      %p72 = por %p70, %p71
      %s74 = sadd.s32 %s73, 1
      %p77 = scmp.eq.s32.totalorder %s18, 1
      %p78 = scmp.ne.s32.totalorder %s73, %s75
      %p79 = scmp.eq.s32.totalorder %s18, 0
      %p80 = por %p78, %p79
      %p81 = scmp.ne.s32.totalorder %s73, %s75
      %p82 = scmp.eq.s32.totalorder %s23, 1
      %p83 = por %p81, %p82
      %p84 = scmp.ne.s32.totalorder %s75, %s76
      %p85 = scmp.eq.s32.totalorder %s23, 0
      %p86 = por %p84, %p85
      %p87 = scmp.ne.s32.totalorder %s75, %s76
      %p88 = scmp.eq.s32.totalorder %s24, 1
      %p89 = por %p87, %p88
      %p91 = scmp.ne.s32.totalorder %s76, %s90
      %p92 = scmp.eq.s32.totalorder %s24, 0
      %p93 = por %p91, %p92
      %s95 = sadd.s32 %s94, 1
      %p98 = scmp.eq.s32.totalorder %s18, 1
      %p99 = scmp.ne.s32.totalorder %s94, %s96
      %p100 = scmp.eq.s32.totalorder %s18, 0
      %p101 = por %p99, %p100
      %p102 = scmp.ne.s32.totalorder %s94, %s96
      %p103 = scmp.eq.s32.totalorder %s23, 1
      %p104 = por %p102, %p103
      %p105 = scmp.ne.s32.totalorder %s96, %s97
      %p106 = scmp.eq.s32.totalorder %s23, 0
      %p107 = por %p105, %p106
      %p108 = scmp.ne.s32.totalorder %s96, %s97
      %p109 = scmp.eq.s32.totalorder %s24, 1
      %p110 = por %p108, %p109
      %p112 = scmp.ne.s32.totalorder %s97, %s111
      %p113 = scmp.eq.s32.totalorder %s24, 0
      %p114 = por %p112, %p113
      %s116 = sadd.s32 %s115, 1
      %p119 = scmp.eq.s32.totalorder %s18, 1
      %p120 = scmp.ne.s32.totalorder %s115, %s117
      %p121 = scmp.eq.s32.totalorder %s18, 0
      %p122 = por %p120, %p121
      %p123 = scmp.ne.s32.totalorder %s115, %s117
      %p124 = scmp.eq.s32.totalorder %s23, 1
      %p125 = por %p123, %p124
      %p126 = scmp.ne.s32.totalorder %s117, %s118
      %p127 = scmp.eq.s32.totalorder %s23, 0
      %p128 = por %p126, %p127
      %p129 = scmp.ne.s32.totalorder %s117, %s118
      %p130 = scmp.eq.s32.totalorder %s24, 1
      %p131 = por %p129, %p130
      %p133 = scmp.ne.s32.totalorder %s118, %s132
      %p134 = scmp.eq.s32.totalorder %s24, 0
      %p135 = por %p133, %p134
      %s136 = ssub.s32 %s18, %s25
      %p137 = scmp.eq.s32.totalorder %s136, 0
      %s139 = sadd.s32 %s138, 1
      %s140 = scalar_select %p137, %s138, %s139
      %p143 = pneg %p137
      %p144 = scmp.eq.s32.totalorder %s18, 1
      %p145 = por %p143, %p144
      %p146 = scmp.ne.s32.totalorder %s138, %s141
      %p147 = scmp.eq.s32.totalorder %s18, 0
      %p148 = por %p146, %p147
      %p149 = scmp.ne.s32.totalorder %s138, %s141
      %p150 = scmp.eq.s32.totalorder %s23, 1
      %p151 = por %p149, %p150
      %p152 = scmp.ne.s32.totalorder %s141, %s142
      %p153 = scmp.eq.s32.totalorder %s23, 0
      %p154 = por %p152, %p153
      %p155 = scmp.ne.s32.totalorder %s141, %s142
      %p156 = scmp.eq.s32.totalorder %s24, 1
      %p157 = por %p155, %p156
      %p159 = scmp.ne.s32.totalorder %s142, %s158
      %p160 = scmp.eq.s32.totalorder %s24, 0
      %p161 = por %p159, %p160
      %p162 = scmp.le.s32.totalorder 1, %s18
      %p163 = scmp.lt.s32.totalorder %s18, 3
      %p164 = pnand %p162, %p163
      %p165 = pneg %p164
      // Predicated region
      $region9: #{tpu_custom_call.1} parent=5 // pred_check
        _
      $region10: #{tpu_custom_call.1} parent=5 // pred_check_branch
        %167 = sbr.rel (%p164) target = $region12
      $region11: #{tpu_custom_call.1} parent=5 // pred_region
        %s168 = ssub.s32 %s18, 1
        // Predicated region
        $region13: #{tpu_custom_call.1} parent=11 // pred_check
          %p169 = pneg %p65
        $region14: #{tpu_custom_call.1} parent=11 // pred_check_branch
          %171 = sbr.rel (%p169) target = $region16
        $region15: #{tpu_custom_call.1} parent=11 // pred_region
          %173 = vsyncadd [#allocation7], 0
          %s174 = sshll.u32 %s1, 4
          %s175 = int_to_ptr.hbm [resolvable:$true] %s174
          %s176 = sshll.u32 [#allocation6], 4
          %s177 = int_to_ptr.vmem [resolvable:$true] %s176
          %182 = dma.hbm_to_vmem [thread:$0]  %s175, 192, %s177, [#allocation7], 64, 64, 4
        $region16: #{tpu_custom_call.1} parent=11 // pred_fallthru
          _
        // Predicated region
        $region17: #{tpu_custom_call.1} parent=11 // pred_check
          %p183 = pneg %p86
        $region18: #{tpu_custom_call.1} parent=11 // pred_check_branch
          %185 = sbr.rel (%p183) target = $region20
        $region19: #{tpu_custom_call.1} parent=11 // pred_region
          _
        $region20: #{tpu_custom_call.1} parent=11 // pred_fallthru
          _
        // Predicated region
        $region21: #{tpu_custom_call.1} parent=11 // pred_check
          %p186 = pneg %p107
        $region22: #{tpu_custom_call.1} parent=11 // pred_check_branch
          %188 = sbr.rel (%p186) target = $region24
        $region23: #{tpu_custom_call.1} parent=11 // pred_region
          %190 = vsyncadd [#allocation7], 0
          %s191 = sshll.u32 %s3, 4
          %s192 = int_to_ptr.hbm [resolvable:$true] %s191
          %s193 = sshll.u32 [#allocation8], 4
          %s194 = int_to_ptr.vmem [resolvable:$true] %s193
          %199 = dma.hbm_to_vmem [thread:$0]  %s192, 1024, %s194, [#allocation7], 64, 64, 4
        $region24: #{tpu_custom_call.1} parent=11 // pred_fallthru
          _
        // Predicated region
        $region25: #{tpu_custom_call.1} parent=11 // pred_check
          %p200 = pneg %p128
        $region26: #{tpu_custom_call.1} parent=11 // pred_check_branch
          %202 = sbr.rel (%p200) target = $region28
        $region27: #{tpu_custom_call.1} parent=11 // pred_region
          _
        $region28: #{tpu_custom_call.1} parent=11 // pred_fallthru
          _
      $region12: #{tpu_custom_call.1} parent=5 // pred_fallthru
        _
      %p203 = scmp.lt.s32.totalorder %s18, 2
      // Predicated region
      $region29: #{tpu_custom_call.1} parent=5 // pred_check
        %p204 = pneg %p203
      $region30: #{tpu_custom_call.1} parent=5 // pred_check_branch
        %206 = sbr.rel (%p204) target = $region32
      $region31: #{tpu_custom_call.1} parent=5 // pred_region
        // Predicated region
        $region33: #{tpu_custom_call.1} parent=31 // pred_check
          %p207 = pneg %p38
        $region34: #{tpu_custom_call.1} parent=31 // pred_check_branch
          %209 = sbr.rel (%p207) target = $region36
        $region35: #{tpu_custom_call.1} parent=31 // pred_region
          %s210 = sand.u32 %s28, 1
          %s211 = scalar_lea.sflag [#allocation4], %s210
          %s212 = sand.u32 %s28, 1
          %s213 = smul.addr %s212, 256
          %s214 = scalar_lea.vmem [#allocation3], %s213
          %216 = vsyncadd %s211, 0
          %s217 = smul.addr %s18, 32
          %s218 = smul.addr %s217, 8
          %s219 = scalar_lea.hbm %s0, %s218
          %s220 = sshll.u32 %s219, 4
          %s221 = int_to_ptr.hbm [resolvable:$true] %s220
          %s222 = sshll.u32 %s214, 4
          %s223 = int_to_ptr.vmem [resolvable:$true] %s222
          %228 = dma.hbm_to_vmem [thread:$0]  %s221, 4096, %s223, %s211, 128, 128, 8
        $region36: #{tpu_custom_call.1} parent=31 // pred_fallthru
          _
      $region32: #{tpu_custom_call.1} parent=5 // pred_fallthru
        _
      %p229 = scmp.le.s32.totalorder 1, %s18
      %p230 = scmp.lt.s32.totalorder %s18, 3
      %p231 = pnand %p229, %p230
      %p232 = pneg %p231
      // Predicated region
      $region37: #{tpu_custom_call.1} parent=5 // pred_check
        _
      $region38: #{tpu_custom_call.1} parent=5 // pred_check_branch
        %234 = sbr.rel (%p231) target = $region40
      $region39: #{tpu_custom_call.1} parent=5 // pred_region
        %s235 = ssub.s32 %s18, 1
        %s236 = sand.u32 %s31, 1
        %s237 = scalar_lea.sflag [#allocation4], %s236
        %s238 = sand.u32 %s31, 1
        %s239 = smul.addr %s238, 256
        %s240 = scalar_lea.vmem [#allocation3], %s239
        // Predicated region
        $region41: #{tpu_custom_call.1} parent=39 // pred_check
          %p241 = pneg %p44
        $region42: #{tpu_custom_call.1} parent=39 // pred_check_branch
          %243 = sbr.rel (%p241) target = $region44
        $region43: #{tpu_custom_call.1} parent=39 // pred_region
          %245 = dma.done %s237, 4096
        $region44: #{tpu_custom_call.1} parent=39 // pred_fallthru
          _
        // Predicated region
        $region45: #{tpu_custom_call.1} parent=39 // pred_check
          %p246 = pneg %p65
        $region46: #{tpu_custom_call.1} parent=39 // pred_check_branch
          %248 = sbr.rel (%p246) target = $region48
        $region47: #{tpu_custom_call.1} parent=39 // pred_region
          %250 = dma.done [#allocation7], 192
        $region48: #{tpu_custom_call.1} parent=39 // pred_fallthru
          _
        // Predicated region
        $region49: #{tpu_custom_call.1} parent=39 // pred_check
          %p251 = pneg %p107
        $region50: #{tpu_custom_call.1} parent=39 // pred_check_branch
          %253 = sbr.rel (%p251) target = $region52
        $region51: #{tpu_custom_call.1} parent=39 // pred_region
          %255 = dma.done [#allocation7], 1024
        $region52: #{tpu_custom_call.1} parent=39 // pred_fallthru
          _
        %s256 = sand.u32 %s31, 1
        %s257 = scalar_lea.sflag [#allocation4], %s256
        %s258 = sand.u32 %s31, 1
        %s259 = smul.addr %s258, 256
        %s260 = scalar_lea.vmem [#allocation3], %s259
        %p261 = pneg %p44
        %p262 = pneg %p41
        %p263 = pneg %p65
        %p264 = pneg %p62
        %p265 = pneg %p86
        %p266 = pneg %p83
        %p267 = pneg %p107
        %p268 = pneg %p104
        %p269 = pneg %p128
        %p270 = pneg %p125
        %p271 = pneg %p154
        %p272 = pneg %p151
        %s273 = sand.u32 %s141, 1
        %s274 = scalar_lea.sflag [#allocation5], %s273
        %s275 = sand.u32 %s141, 1
        %s276 = smul.addr %s275, 256
        %s277 = scalar_lea.vmem [#allocation9], %s276
        %v278 = vld [vmem:[%s240] sm:$0xff]
        %v279 = vld [vmem:[%s240 + $0x8] sm:$0xff]
        %v280 = vld [vmem:[%s240 + $0x10] sm:$0xff]
        %v281 = vld [vmem:[%s240 + $0x18] sm:$0xff]
        %v282 = vld [vmem:[%s240 + $0x20] sm:$0xff]
        %v283 = vld [vmem:[%s240 + $0x28] sm:$0xff]
        %v284 = vld [vmem:[%s240 + $0x30] sm:$0xff]
        %v285 = vld [vmem:[%s240 + $0x38] sm:$0xff]
        %v286 = vld [vmem:[%s240 + $0x40] sm:$0xff]
        %v287 = vld [vmem:[%s240 + $0x48] sm:$0xff]
        %v288 = vld [vmem:[%s240 + $0x50] sm:$0xff]
        %v289 = vld [vmem:[%s240 + $0x58] sm:$0xff]
        %v290 = vld [vmem:[%s240 + $0x60] sm:$0xff]
        %v291 = vld [vmem:[%s240 + $0x68] sm:$0xff]
        %v292 = vld [vmem:[%s240 + $0x70] sm:$0xff]
        %v293 = vld [vmem:[%s240 + $0x78] sm:$0xff]
        %v294 = vld [vmem:[%s240 + $0x80] sm:$0xff]
        %v295 = vld [vmem:[%s240 + $0x88] sm:$0xff]
        %v296 = vld [vmem:[%s240 + $0x90] sm:$0xff]
        %v297 = vld [vmem:[%s240 + $0x98] sm:$0xff]
        %v298 = vld [vmem:[%s240 + $0xa0] sm:$0xff]
        %v299 = vld [vmem:[%s240 + $0xa8] sm:$0xff]
        %v300 = vld [vmem:[%s240 + $0xb0] sm:$0xff]
        %v301 = vld [vmem:[%s240 + $0xb8] sm:$0xff]
        %v302 = vld [vmem:[%s240 + $0xc0] sm:$0xff]
        %v303 = vld [vmem:[%s240 + $0xc8] sm:$0xff]
        %v304 = vld [vmem:[%s240 + $0xd0] sm:$0xff]
        %v305 = vld [vmem:[%s240 + $0xd8] sm:$0xff]
        %v306 = vld [vmem:[%s240 + $0xe0] sm:$0xff]
        %v307 = vld [vmem:[%s240 + $0xe8] sm:$0xff]
        %v308 = vld [vmem:[%s240 + $0xf0] sm:$0xff]
        %v309 = vld [vmem:[%s240 + $0xf8] sm:$0xff]
        %v310 = vld [vmem:[#allocation6] sm:$0x7]
        %v311 = vld [vmem:[#allocation6 + $0x4] sm:$0x7]
        %v312 = vld [vmem:[#allocation6 + $0x8] sm:$0x7]
        %v313 = vlaneseq
        %v314 = vshrl.u32 %v313, 7
        %v315 = vadd.s32 %v314, 8
        %vm316 = vcmp.eq.s32.totalorder %v314, 0
        %vm317 = vcmp.eq.s32.totalorder %v315, 0
        %v318 = vrot.slane %v278, 7
        %v319 = vrot.slane %v280, 7
        %v320 = vrot.slane %v282, 7
        %v321 = vrot.slane %v284, 7
        %v322 = vrot.slane %v286, 7
        %v323 = vrot.slane %v288, 7
        %v324 = vrot.slane %v290, 7
        %v325 = vrot.slane %v292, 7
        %v326 = vrot.slane %v294, 7
        %v327 = vrot.slane %v296, 7
        %v328 = vrot.slane %v298, 7
        %v329 = vrot.slane %v300, 7
        %v330 = vrot.slane %v302, 7
        %v331 = vrot.slane %v304, 7
        %v332 = vrot.slane %v306, 7
        %v333 = vrot.slane %v308, 7
        %v334 = vrot.slane %v279, 7
        %v335 = vrot.slane %v281, 7
        %v336 = vrot.slane %v283, 7
        %v337 = vrot.slane %v285, 7
        %v338 = vrot.slane %v287, 7
        %v339 = vrot.slane %v289, 7
        %v340 = vrot.slane %v291, 7
        %v341 = vrot.slane %v293, 7
        %v342 = vrot.slane %v295, 7
        %v343 = vrot.slane %v297, 7
        %v344 = vrot.slane %v299, 7
        %v345 = vrot.slane %v301, 7
        %v346 = vrot.slane %v303, 7
        %v347 = vrot.slane %v305, 7
        %v348 = vrot.slane %v307, 7
        %v349 = vrot.slane %v309, 7
        %vm350 = vcmp.lt.s32.totalorder %v314, 1
        %v351 = vsel %vm350, %v318, %v334
        %v352 = vsel %vm350, %v319, %v335
        %v353 = vsel %vm350, %v320, %v336
        %v354 = vsel %vm350, %v321, %v337
        %v355 = vsel %vm350, %v322, %v338
        %v356 = vsel %vm350, %v323, %v339
        %v357 = vsel %vm350, %v324, %v340
        %v358 = vsel %vm350, %v325, %v341
        %v359 = vsel %vm350, %v326, %v342
        %v360 = vsel %vm350, %v327, %v343
        %v361 = vsel %vm350, %v328, %v344
        %v362 = vsel %vm350, %v329, %v345
        %v363 = vsel %vm350, %v330, %v346
        %v364 = vsel %vm350, %v331, %v347
        %v365 = vsel %vm350, %v332, %v348
        %v366 = vsel %vm350, %v333, %v349
        %v367 = vsel %vm350, %v334, %v318
        %v368 = vsel %vm350, %v335, %v319
        %v369 = vsel %vm350, %v336, %v320
        %v370 = vsel %vm350, %v337, %v321
        %v371 = vsel %vm350, %v338, %v322
        %v372 = vsel %vm350, %v339, %v323
        %v373 = vsel %vm350, %v340, %v324
        %v374 = vsel %vm350, %v341, %v325
        %v375 = vsel %vm350, %v342, %v326
        %v376 = vsel %vm350, %v343, %v327
        %v377 = vsel %vm350, %v344, %v328
        %v378 = vsel %vm350, %v345, %v329
        %v379 = vsel %vm350, %v346, %v330
        %v380 = vsel %vm350, %v347, %v331
        %v381 = vsel %vm350, %v348, %v332
        %v382 = vsel %vm350, %v349, %v333
        %v383 = vsel %vm316, 0.0, %v367
        %v384 = vsel %vm317, 0.0, %v351
        %v385 = vsel %vm316, 0.0, %v368
        %v386 = vsel %vm317, 0.0, %v352
        %v387 = vsel %vm316, 0.0, %v369
        %v388 = vsel %vm317, 0.0, %v353
        %v389 = vsel %vm316, 0.0, %v370
        %v390 = vsel %vm317, 0.0, %v354
        %v391 = vsel %vm316, 0.0, %v371
        %v392 = vsel %vm317, 0.0, %v355
        %v393 = vsel %vm316, 0.0, %v372
        %v394 = vsel %vm317, 0.0, %v356
        %v395 = vsel %vm316, 0.0, %v373
        %v396 = vsel %vm317, 0.0, %v357
        %v397 = vsel %vm316, 0.0, %v374
        %v398 = vsel %vm317, 0.0, %v358
        %v399 = vsel %vm316, 0.0, %v375
        %v400 = vsel %vm317, 0.0, %v359
        %v401 = vsel %vm316, 0.0, %v376
        %v402 = vsel %vm317, 0.0, %v360
        %v403 = vsel %vm316, 0.0, %v377
        %v404 = vsel %vm317, 0.0, %v361
        %v405 = vsel %vm316, 0.0, %v378
        %v406 = vsel %vm317, 0.0, %v362
        %v407 = vsel %vm316, 0.0, %v379
        %v408 = vsel %vm317, 0.0, %v363
        %v409 = vsel %vm316, 0.0, %v380
        %v410 = vsel %vm317, 0.0, %v364
        %v411 = vsel %vm316, 0.0, %v381
        %v412 = vsel %vm317, 0.0, %v365
        %v413 = vsel %vm316, 0.0, %v382
        %v414 = vsel %vm317, 0.0, %v366
        %vm415 = vcmp.eq.s32.totalorder %v314, 15
        %vm416 = vcmp.eq.s32.totalorder %v315, 15
        %v417 = vrot.slane %v278, 1
        %v418 = vrot.slane %v280, 1
        %v419 = vrot.slane %v282, 1
        %v420 = vrot.slane %v284, 1
        %v421 = vrot.slane %v286, 1
        %v422 = vrot.slane %v288, 1
        %v423 = vrot.slane %v290, 1
        %v424 = vrot.slane %v292, 1
        %v425 = vrot.slane %v294, 1
        %v426 = vrot.slane %v296, 1
        %v427 = vrot.slane %v298, 1
        %v428 = vrot.slane %v300, 1
        %v429 = vrot.slane %v302, 1
        %v430 = vrot.slane %v304, 1
        %v431 = vrot.slane %v306, 1
        %v432 = vrot.slane %v308, 1
        %v433 = vrot.slane %v279, 1
        %v434 = vrot.slane %v281, 1
        %v435 = vrot.slane %v283, 1
        %v436 = vrot.slane %v285, 1
        %v437 = vrot.slane %v287, 1
        %v438 = vrot.slane %v289, 1
        %v439 = vrot.slane %v291, 1
        %v440 = vrot.slane %v293, 1
        %v441 = vrot.slane %v295, 1
        %v442 = vrot.slane %v297, 1
        %v443 = vrot.slane %v299, 1
        %v444 = vrot.slane %v301, 1
        %v445 = vrot.slane %v303, 1
        %v446 = vrot.slane %v305, 1
        %v447 = vrot.slane %v307, 1
        %v448 = vrot.slane %v309, 1
        %vm449 = vcmp.lt.s32.totalorder %v314, 7
        %v450 = vsel %vm449, %v417, %v433
        %v451 = vsel %vm449, %v418, %v434
        %v452 = vsel %vm449, %v419, %v435
        %v453 = vsel %vm449, %v420, %v436
        %v454 = vsel %vm449, %v421, %v437
        %v455 = vsel %vm449, %v422, %v438
        %v456 = vsel %vm449, %v423, %v439
        %v457 = vsel %vm449, %v424, %v440
        %v458 = vsel %vm449, %v425, %v441
        %v459 = vsel %vm449, %v426, %v442
        %v460 = vsel %vm449, %v427, %v443
        %v461 = vsel %vm449, %v428, %v444
        %v462 = vsel %vm449, %v429, %v445
        %v463 = vsel %vm449, %v430, %v446
        %v464 = vsel %vm449, %v431, %v447
        %v465 = vsel %vm449, %v432, %v448
        %v466 = vsel %vm449, %v433, %v417
        %v467 = vsel %vm449, %v434, %v418
        %v468 = vsel %vm449, %v435, %v419
        %v469 = vsel %vm449, %v436, %v420
        %v470 = vsel %vm449, %v437, %v421
        %v471 = vsel %vm449, %v438, %v422
        %v472 = vsel %vm449, %v439, %v423
        %v473 = vsel %vm449, %v440, %v424
        %v474 = vsel %vm449, %v441, %v425
        %v475 = vsel %vm449, %v442, %v426
        %v476 = vsel %vm449, %v443, %v427
        %v477 = vsel %vm449, %v444, %v428
        %v478 = vsel %vm449, %v445, %v429
        %v479 = vsel %vm449, %v446, %v430
        %v480 = vsel %vm449, %v447, %v431
        %v481 = vsel %vm449, %v448, %v432
        %v482 = vsel %vm415, 0.0, %v450
        %v483 = vsel %vm416, 0.0, %v466
        %v484 = vsel %vm415, 0.0, %v451
        %v485 = vsel %vm416, 0.0, %v467
        %v486 = vsel %vm415, 0.0, %v452
        %v487 = vsel %vm416, 0.0, %v468
        %v488 = vsel %vm415, 0.0, %v453
        %v489 = vsel %vm416, 0.0, %v469
        %v490 = vsel %vm415, 0.0, %v454
        %v491 = vsel %vm416, 0.0, %v470
        %v492 = vsel %vm415, 0.0, %v455
        %v493 = vsel %vm416, 0.0, %v471
        %v494 = vsel %vm415, 0.0, %v456
        %v495 = vsel %vm416, 0.0, %v472
        %v496 = vsel %vm415, 0.0, %v457
        %v497 = vsel %vm416, 0.0, %v473
        %v498 = vsel %vm415, 0.0, %v458
        %v499 = vsel %vm416, 0.0, %v474
        %v500 = vsel %vm415, 0.0, %v459
        %v501 = vsel %vm416, 0.0, %v475
        %v502 = vsel %vm415, 0.0, %v460
        %v503 = vsel %vm416, 0.0, %v476
        %v504 = vsel %vm415, 0.0, %v461
        %v505 = vsel %vm416, 0.0, %v477
        %v506 = vsel %vm415, 0.0, %v462
        %v507 = vsel %vm416, 0.0, %v478
        %v508 = vsel %vm415, 0.0, %v463
        %v509 = vsel %vm416, 0.0, %v479
        %v510 = vsel %vm415, 0.0, %v464
        %v511 = vsel %vm416, 0.0, %v480
        %v512 = vsel %vm415, 0.0, %v465
        %v513 = vsel %vm416, 0.0, %v481
        %v514 = vperm.slane %v311, 0
        %v515 = vmul.f32 %v383, %v514
        %v516 = vmul.f32 %v384, %v514
        %v517 = vmul.f32 %v385, %v514
        %v518 = vmul.f32 %v386, %v514
        %v519 = vmul.f32 %v387, %v514
        %v520 = vmul.f32 %v388, %v514
        %v521 = vmul.f32 %v389, %v514
        %v522 = vmul.f32 %v390, %v514
        %v523 = vmul.f32 %v391, %v514
        %v524 = vmul.f32 %v392, %v514
        %v525 = vmul.f32 %v393, %v514
        %v526 = vmul.f32 %v394, %v514
        %v527 = vmul.f32 %v395, %v514
        %v528 = vmul.f32 %v396, %v514
        %v529 = vmul.f32 %v397, %v514
        %v530 = vmul.f32 %v398, %v514
        %v531 = vmul.f32 %v399, %v514
        %v532 = vmul.f32 %v400, %v514
        %v533 = vmul.f32 %v401, %v514
        %v534 = vmul.f32 %v402, %v514
        %v535 = vmul.f32 %v403, %v514
        %v536 = vmul.f32 %v404, %v514
        %v537 = vmul.f32 %v405, %v514
        %v538 = vmul.f32 %v406, %v514
        %v539 = vmul.f32 %v407, %v514
        %v540 = vmul.f32 %v408, %v514
        %v541 = vmul.f32 %v409, %v514
        %v542 = vmul.f32 %v410, %v514
        %v543 = vmul.f32 %v411, %v514
        %v544 = vmul.f32 %v412, %v514
        %v545 = vmul.f32 %v413, %v514
        %v546 = vmul.f32 %v414, %v514
        %v547 = vperm.slane %v311, 1
        %v548 = vmul.f32 %v278, %v547
        %v549 = vmul.f32 %v279, %v547
        %v550 = vmul.f32 %v280, %v547
        %v551 = vmul.f32 %v281, %v547
        %v552 = vmul.f32 %v282, %v547
        %v553 = vmul.f32 %v283, %v547
        %v554 = vmul.f32 %v284, %v547
        %v555 = vmul.f32 %v285, %v547
        %v556 = vmul.f32 %v286, %v547
        %v557 = vmul.f32 %v287, %v547
        %v558 = vmul.f32 %v288, %v547
        %v559 = vmul.f32 %v289, %v547
        %v560 = vmul.f32 %v290, %v547
        %v561 = vmul.f32 %v291, %v547
        %v562 = vmul.f32 %v292, %v547
        %v563 = vmul.f32 %v293, %v547
        %v564 = vmul.f32 %v294, %v547
        %v565 = vmul.f32 %v295, %v547
        %v566 = vmul.f32 %v296, %v547
        %v567 = vmul.f32 %v297, %v547
        %v568 = vmul.f32 %v298, %v547
        %v569 = vmul.f32 %v299, %v547
        %v570 = vmul.f32 %v300, %v547
        %v571 = vmul.f32 %v301, %v547
        %v572 = vmul.f32 %v302, %v547
        %v573 = vmul.f32 %v303, %v547
        %v574 = vmul.f32 %v304, %v547
        %v575 = vmul.f32 %v305, %v547
        %v576 = vmul.f32 %v306, %v547
        %v577 = vmul.f32 %v307, %v547
        %v578 = vmul.f32 %v308, %v547
        %v579 = vmul.f32 %v309, %v547
        %v580 = vadd.f32 %v515, %v548
        %v581 = vadd.f32 %v516, %v549
        %v582 = vadd.f32 %v517, %v550
        %v583 = vadd.f32 %v518, %v551
        %v584 = vadd.f32 %v519, %v552
        %v585 = vadd.f32 %v520, %v553
        %v586 = vadd.f32 %v521, %v554
        %v587 = vadd.f32 %v522, %v555
        %v588 = vadd.f32 %v523, %v556
        %v589 = vadd.f32 %v524, %v557
        %v590 = vadd.f32 %v525, %v558
        %v591 = vadd.f32 %v526, %v559
        %v592 = vadd.f32 %v527, %v560
        %v593 = vadd.f32 %v528, %v561
        %v594 = vadd.f32 %v529, %v562
        %v595 = vadd.f32 %v530, %v563
        %v596 = vadd.f32 %v531, %v564
        %v597 = vadd.f32 %v532, %v565
        %v598 = vadd.f32 %v533, %v566
        %v599 = vadd.f32 %v534, %v567
        %v600 = vadd.f32 %v535, %v568
        %v601 = vadd.f32 %v536, %v569
        %v602 = vadd.f32 %v537, %v570
        %v603 = vadd.f32 %v538, %v571
        %v604 = vadd.f32 %v539, %v572
        %v605 = vadd.f32 %v540, %v573
        %v606 = vadd.f32 %v541, %v574
        %v607 = vadd.f32 %v542, %v575
        %v608 = vadd.f32 %v543, %v576
        %v609 = vadd.f32 %v544, %v577
        %v610 = vadd.f32 %v545, %v578
        %v611 = vadd.f32 %v546, %v579
        %v612 = vperm.slane %v311, 2
        %v613 = vmul.f32 %v482, %v612
        %v614 = vmul.f32 %v483, %v612
        %v615 = vmul.f32 %v484, %v612
        %v616 = vmul.f32 %v485, %v612
        %v617 = vmul.f32 %v486, %v612
        %v618 = vmul.f32 %v487, %v612
        %v619 = vmul.f32 %v488, %v612
        %v620 = vmul.f32 %v489, %v612
        %v621 = vmul.f32 %v490, %v612
        %v622 = vmul.f32 %v491, %v612
        %v623 = vmul.f32 %v492, %v612
        %v624 = vmul.f32 %v493, %v612
        %v625 = vmul.f32 %v494, %v612
        %v626 = vmul.f32 %v495, %v612
        %v627 = vmul.f32 %v496, %v612
        %v628 = vmul.f32 %v497, %v612
        %v629 = vmul.f32 %v498, %v612
        %v630 = vmul.f32 %v499, %v612
        %v631 = vmul.f32 %v500, %v612
        %v632 = vmul.f32 %v501, %v612
        %v633 = vmul.f32 %v502, %v612
        %v634 = vmul.f32 %v503, %v612
        %v635 = vmul.f32 %v504, %v612
        %v636 = vmul.f32 %v505, %v612
        %v637 = vmul.f32 %v506, %v612
        %v638 = vmul.f32 %v507, %v612
        %v639 = vmul.f32 %v508, %v612
        %v640 = vmul.f32 %v509, %v612
        %v641 = vmul.f32 %v510, %v612
        %v642 = vmul.f32 %v511, %v612
        %v643 = vmul.f32 %v512, %v612
        %v644 = vmul.f32 %v513, %v612
        %v645 = vadd.f32 %v580, %v613
        %v646 = vadd.f32 %v581, %v614
        %v647 = vadd.f32 %v582, %v615
        %v648 = vadd.f32 %v583, %v616
        %v649 = vadd.f32 %v584, %v617
        %v650 = vadd.f32 %v585, %v618
        %v651 = vadd.f32 %v586, %v619
        %v652 = vadd.f32 %v587, %v620
        %v653 = vadd.f32 %v588, %v621
        %v654 = vadd.f32 %v589, %v622
        %v655 = vadd.f32 %v590, %v623
        %v656 = vadd.f32 %v591, %v624
        %v657 = vadd.f32 %v592, %v625
        %v658 = vadd.f32 %v593, %v626
        %v659 = vadd.f32 %v594, %v627
        %v660 = vadd.f32 %v595, %v628
        %v661 = vadd.f32 %v596, %v629
        %v662 = vadd.f32 %v597, %v630
        %v663 = vadd.f32 %v598, %v631
        %v664 = vadd.f32 %v599, %v632
        %v665 = vadd.f32 %v600, %v633
        %v666 = vadd.f32 %v601, %v634
        %v667 = vadd.f32 %v602, %v635
        %v668 = vadd.f32 %v603, %v636
        %v669 = vadd.f32 %v604, %v637
        %v670 = vadd.f32 %v605, %v638
        %v671 = vadd.f32 %v606, %v639
        %v672 = vadd.f32 %v607, %v640
        %v673 = vadd.f32 %v608, %v641
        %v674 = vadd.f32 %v609, %v642
        %v675 = vadd.f32 %v610, %v643
        %v676 = vadd.f32 %v611, %v644
        %677 = vst [vmem:[#allocation2] sm:$0xff] %v645
        %678 = vst [vmem:[#allocation2 + $0x8] sm:$0xff] %v646
        %679 = vst [vmem:[#allocation2 + $0x10] sm:$0xff] %v647
        %680 = vst [vmem:[#allocation2 + $0x18] sm:$0xff] %v648
        %681 = vst [vmem:[#allocation2 + $0x20] sm:$0xff] %v649
        %682 = vst [vmem:[#allocation2 + $0x28] sm:$0xff] %v650
        %683 = vst [vmem:[#allocation2 + $0x30] sm:$0xff] %v651
        %684 = vst [vmem:[#allocation2 + $0x38] sm:$0xff] %v652
        %685 = vst [vmem:[#allocation2 + $0x40] sm:$0xff] %v653
        %686 = vst [vmem:[#allocation2 + $0x48] sm:$0xff] %v654
        %687 = vst [vmem:[#allocation2 + $0x50] sm:$0xff] %v655
        %688 = vst [vmem:[#allocation2 + $0x58] sm:$0xff] %v656
        %689 = vst [vmem:[#allocation2 + $0x60] sm:$0xff] %v657
        %690 = vst [vmem:[#allocation2 + $0x68] sm:$0xff] %v658
        %691 = vst [vmem:[#allocation2 + $0x70] sm:$0xff] %v659
        %692 = vst [vmem:[#allocation2 + $0x78] sm:$0xff] %v660
        %693 = vst [vmem:[#allocation2 + $0x80] sm:$0xff] %v661
        %694 = vst [vmem:[#allocation2 + $0x88] sm:$0xff] %v662
        %695 = vst [vmem:[#allocation2 + $0x90] sm:$0xff] %v663
        %696 = vst [vmem:[#allocation2 + $0x98] sm:$0xff] %v664
        %697 = vst [vmem:[#allocation2 + $0xa0] sm:$0xff] %v665
        %698 = vst [vmem:[#allocation2 + $0xa8] sm:$0xff] %v666
        %699 = vst [vmem:[#allocation2 + $0xb0] sm:$0xff] %v667
        %700 = vst [vmem:[#allocation2 + $0xb8] sm:$0xff] %v668
        %701 = vst [vmem:[#allocation2 + $0xc0] sm:$0xff] %v669
        %702 = vst [vmem:[#allocation2 + $0xc8] sm:$0xff] %v670
        %703 = vst [vmem:[#allocation2 + $0xd0] sm:$0xff] %v671
        %704 = vst [vmem:[#allocation2 + $0xd8] sm:$0xff] %v672
        %705 = vst [vmem:[#allocation2 + $0xe0] sm:$0xff] %v673
        %706 = vst [vmem:[#allocation2 + $0xe8] sm:$0xff] %v674
        %707 = vst [vmem:[#allocation2 + $0xf0] sm:$0xff] %v675
        %708 = vst [vmem:[#allocation2 + $0xf8] sm:$0xff] %v676
        %v709 = vperm.slane %v310, 0
        %v710 = vmul.f32 %v383, %v709
        %v711 = vmul.f32 %v384, %v709
        %v712 = vmul.f32 %v385, %v709
        %v713 = vmul.f32 %v386, %v709
        %v714 = vmul.f32 %v387, %v709
        %v715 = vmul.f32 %v388, %v709
        %v716 = vmul.f32 %v389, %v709
        %v717 = vmul.f32 %v390, %v709
        %v718 = vmul.f32 %v391, %v709
        %v719 = vmul.f32 %v392, %v709
        %v720 = vmul.f32 %v393, %v709
        %v721 = vmul.f32 %v394, %v709
        %v722 = vmul.f32 %v395, %v709
        %v723 = vmul.f32 %v396, %v709
        %v724 = vmul.f32 %v397, %v709
        %v725 = vmul.f32 %v398, %v709
        %v726 = vmul.f32 %v399, %v709
        %v727 = vmul.f32 %v400, %v709
        %v728 = vmul.f32 %v401, %v709
        %v729 = vmul.f32 %v402, %v709
        %v730 = vmul.f32 %v403, %v709
        %v731 = vmul.f32 %v404, %v709
        %v732 = vmul.f32 %v405, %v709
        %v733 = vmul.f32 %v406, %v709
        %v734 = vmul.f32 %v407, %v709
        %v735 = vmul.f32 %v408, %v709
        %v736 = vmul.f32 %v409, %v709
        %v737 = vmul.f32 %v410, %v709
        %v738 = vmul.f32 %v411, %v709
        %v739 = vmul.f32 %v412, %v709
        %v740 = vperm.slane %v310, 1
        %v741 = vmul.f32 %v278, %v740
        %v742 = vmul.f32 %v279, %v740
        %v743 = vmul.f32 %v280, %v740
        %v744 = vmul.f32 %v281, %v740
        %v745 = vmul.f32 %v282, %v740
        %v746 = vmul.f32 %v283, %v740
        %v747 = vmul.f32 %v284, %v740
        %v748 = vmul.f32 %v285, %v740
        %v749 = vmul.f32 %v286, %v740
        %v750 = vmul.f32 %v287, %v740
        %v751 = vmul.f32 %v288, %v740
        %v752 = vmul.f32 %v289, %v740
        %v753 = vmul.f32 %v290, %v740
        %v754 = vmul.f32 %v291, %v740
        %v755 = vmul.f32 %v292, %v740
        %v756 = vmul.f32 %v293, %v740
        %v757 = vmul.f32 %v294, %v740
        %v758 = vmul.f32 %v295, %v740
        %v759 = vmul.f32 %v296, %v740
        %v760 = vmul.f32 %v297, %v740
        %v761 = vmul.f32 %v298, %v740
        %v762 = vmul.f32 %v299, %v740
        %v763 = vmul.f32 %v300, %v740
        %v764 = vmul.f32 %v301, %v740
        %v765 = vmul.f32 %v302, %v740
        %v766 = vmul.f32 %v303, %v740
        %v767 = vmul.f32 %v304, %v740
        %v768 = vmul.f32 %v305, %v740
        %v769 = vmul.f32 %v306, %v740
        %v770 = vmul.f32 %v307, %v740
        %v771 = vadd.f32 %v710, %v741
        %v772 = vadd.f32 %v711, %v742
        %v773 = vadd.f32 %v712, %v743
        %v774 = vadd.f32 %v713, %v744
        %v775 = vadd.f32 %v714, %v745
        %v776 = vadd.f32 %v715, %v746
        %v777 = vadd.f32 %v716, %v747
        %v778 = vadd.f32 %v717, %v748
        %v779 = vadd.f32 %v718, %v749
        %v780 = vadd.f32 %v719, %v750
        %v781 = vadd.f32 %v720, %v751
        %v782 = vadd.f32 %v721, %v752
        %v783 = vadd.f32 %v722, %v753
        %v784 = vadd.f32 %v723, %v754
        %v785 = vadd.f32 %v724, %v755
        %v786 = vadd.f32 %v725, %v756
        %v787 = vadd.f32 %v726, %v757
        %v788 = vadd.f32 %v727, %v758
        %v789 = vadd.f32 %v728, %v759
        %v790 = vadd.f32 %v729, %v760
        %v791 = vadd.f32 %v730, %v761
        %v792 = vadd.f32 %v731, %v762
        %v793 = vadd.f32 %v732, %v763
        %v794 = vadd.f32 %v733, %v764
        %v795 = vadd.f32 %v734, %v765
        %v796 = vadd.f32 %v735, %v766
        %v797 = vadd.f32 %v736, %v767
        %v798 = vadd.f32 %v737, %v768
        %v799 = vadd.f32 %v738, %v769
        %v800 = vadd.f32 %v739, %v770
        %v801 = vperm.slane %v310, 2
        %v802 = vmul.f32 %v482, %v801
        %v803 = vmul.f32 %v483, %v801
        %v804 = vmul.f32 %v484, %v801
        %v805 = vmul.f32 %v485, %v801
        %v806 = vmul.f32 %v486, %v801
        %v807 = vmul.f32 %v487, %v801
        %v808 = vmul.f32 %v488, %v801
        %v809 = vmul.f32 %v489, %v801
        %v810 = vmul.f32 %v490, %v801
        %v811 = vmul.f32 %v491, %v801
        %v812 = vmul.f32 %v492, %v801
        %v813 = vmul.f32 %v493, %v801
        %v814 = vmul.f32 %v494, %v801
        %v815 = vmul.f32 %v495, %v801
        %v816 = vmul.f32 %v496, %v801
        %v817 = vmul.f32 %v497, %v801
        %v818 = vmul.f32 %v498, %v801
        %v819 = vmul.f32 %v499, %v801
        %v820 = vmul.f32 %v500, %v801
        %v821 = vmul.f32 %v501, %v801
        %v822 = vmul.f32 %v502, %v801
        %v823 = vmul.f32 %v503, %v801
        %v824 = vmul.f32 %v504, %v801
        %v825 = vmul.f32 %v505, %v801
        %v826 = vmul.f32 %v506, %v801
        %v827 = vmul.f32 %v507, %v801
        %v828 = vmul.f32 %v508, %v801
        %v829 = vmul.f32 %v509, %v801
        %v830 = vmul.f32 %v510, %v801
        %v831 = vmul.f32 %v511, %v801
        %v832 = vadd.f32 %v771, %v802
        %v833 = vadd.f32 %v772, %v803
        %v834 = vadd.f32 %v773, %v804
        %v835 = vadd.f32 %v774, %v805
        %v836 = vadd.f32 %v775, %v806
        %v837 = vadd.f32 %v776, %v807
        %v838 = vadd.f32 %v777, %v808
        %v839 = vadd.f32 %v778, %v809
        %v840 = vadd.f32 %v779, %v810
        %v841 = vadd.f32 %v780, %v811
        %v842 = vadd.f32 %v781, %v812
        %v843 = vadd.f32 %v782, %v813
        %v844 = vadd.f32 %v783, %v814
        %v845 = vadd.f32 %v784, %v815
        %v846 = vadd.f32 %v785, %v816
        %v847 = vadd.f32 %v786, %v817
        %v848 = vadd.f32 %v787, %v818
        %v849 = vadd.f32 %v788, %v819
        %v850 = vadd.f32 %v789, %v820
        %v851 = vadd.f32 %v790, %v821
        %v852 = vadd.f32 %v791, %v822
        %v853 = vadd.f32 %v792, %v823
        %v854 = vadd.f32 %v793, %v824
        %v855 = vadd.f32 %v794, %v825
        %v856 = vadd.f32 %v795, %v826
        %v857 = vadd.f32 %v796, %v827
        %v858 = vadd.f32 %v797, %v828
        %v859 = vadd.f32 %v798, %v829
        %v860 = vadd.f32 %v799, %v830
        %v861 = vadd.f32 %v800, %v831
        %s862 = scalar_lea.vmem [#allocation2], 16
        %v863 = vld [vmem:[%s862] sm:$0xff]
        %v864 = vld [vmem:[%s862 + $0x8] sm:$0xff]
        %v865 = vld [vmem:[%s862 + $0x10] sm:$0xff]
        %v866 = vld [vmem:[%s862 + $0x18] sm:$0xff]
        %v867 = vld [vmem:[%s862 + $0x20] sm:$0xff]
        %v868 = vld [vmem:[%s862 + $0x28] sm:$0xff]
        %v869 = vld [vmem:[%s862 + $0x30] sm:$0xff]
        %v870 = vld [vmem:[%s862 + $0x38] sm:$0xff]
        %v871 = vld [vmem:[%s862 + $0x40] sm:$0xff]
        %v872 = vld [vmem:[%s862 + $0x48] sm:$0xff]
        %v873 = vld [vmem:[%s862 + $0x50] sm:$0xff]
        %v874 = vld [vmem:[%s862 + $0x58] sm:$0xff]
        %v875 = vld [vmem:[%s862 + $0x60] sm:$0xff]
        %v876 = vld [vmem:[%s862 + $0x68] sm:$0xff]
        %v877 = vld [vmem:[%s862 + $0x70] sm:$0xff]
        %v878 = vld [vmem:[%s862 + $0x78] sm:$0xff]
        %v879 = vld [vmem:[%s862 + $0x80] sm:$0xff]
        %v880 = vld [vmem:[%s862 + $0x88] sm:$0xff]
        %v881 = vld [vmem:[%s862 + $0x90] sm:$0xff]
        %v882 = vld [vmem:[%s862 + $0x98] sm:$0xff]
        %v883 = vld [vmem:[%s862 + $0xa0] sm:$0xff]
        %v884 = vld [vmem:[%s862 + $0xa8] sm:$0xff]
        %v885 = vld [vmem:[%s862 + $0xb0] sm:$0xff]
        %v886 = vld [vmem:[%s862 + $0xb8] sm:$0xff]
        %v887 = vld [vmem:[%s862 + $0xc0] sm:$0xff]
        %v888 = vld [vmem:[%s862 + $0xc8] sm:$0xff]
        %v889 = vld [vmem:[%s862 + $0xd0] sm:$0xff]
        %v890 = vld [vmem:[%s862 + $0xd8] sm:$0xff]
        %v891 = vld [vmem:[%s862 + $0xe0] sm:$0xff]
        %v892 = vld [vmem:[%s862 + $0xe8] sm:$0xff]
        %v893 = vadd.f32 %v863, %v832
        %v894 = vadd.f32 %v864, %v833
        %v895 = vadd.f32 %v865, %v834
        %v896 = vadd.f32 %v866, %v835
        %v897 = vadd.f32 %v867, %v836
        %v898 = vadd.f32 %v868, %v837
        %v899 = vadd.f32 %v869, %v838
        %v900 = vadd.f32 %v870, %v839
        %v901 = vadd.f32 %v871, %v840
        %v902 = vadd.f32 %v872, %v841
        %v903 = vadd.f32 %v873, %v842
        %v904 = vadd.f32 %v874, %v843
        %v905 = vadd.f32 %v875, %v844
        %v906 = vadd.f32 %v876, %v845
        %v907 = vadd.f32 %v877, %v846
        %v908 = vadd.f32 %v878, %v847
        %v909 = vadd.f32 %v879, %v848
        %v910 = vadd.f32 %v880, %v849
        %v911 = vadd.f32 %v881, %v850
        %v912 = vadd.f32 %v882, %v851
        %v913 = vadd.f32 %v883, %v852
        %v914 = vadd.f32 %v884, %v853
        %v915 = vadd.f32 %v885, %v854
        %v916 = vadd.f32 %v886, %v855
        %v917 = vadd.f32 %v887, %v856
        %v918 = vadd.f32 %v888, %v857
        %v919 = vadd.f32 %v889, %v858
        %v920 = vadd.f32 %v890, %v859
        %v921 = vadd.f32 %v891, %v860
        %v922 = vadd.f32 %v892, %v861
        %923 = vst [vmem:[%s862] sm:$0xff] %v893
        %924 = vst [vmem:[%s862 + $0x8] sm:$0xff] %v894
        %925 = vst [vmem:[%s862 + $0x10] sm:$0xff] %v895
        %926 = vst [vmem:[%s862 + $0x18] sm:$0xff] %v896
        %927 = vst [vmem:[%s862 + $0x20] sm:$0xff] %v897
        %928 = vst [vmem:[%s862 + $0x28] sm:$0xff] %v898
        %929 = vst [vmem:[%s862 + $0x30] sm:$0xff] %v899
        %930 = vst [vmem:[%s862 + $0x38] sm:$0xff] %v900
        %931 = vst [vmem:[%s862 + $0x40] sm:$0xff] %v901
        %932 = vst [vmem:[%s862 + $0x48] sm:$0xff] %v902
        %933 = vst [vmem:[%s862 + $0x50] sm:$0xff] %v903
        %934 = vst [vmem:[%s862 + $0x58] sm:$0xff] %v904
        %935 = vst [vmem:[%s862 + $0x60] sm:$0xff] %v905
        %936 = vst [vmem:[%s862 + $0x68] sm:$0xff] %v906
        %937 = vst [vmem:[%s862 + $0x70] sm:$0xff] %v907
        %938 = vst [vmem:[%s862 + $0x78] sm:$0xff] %v908
        %939 = vst [vmem:[%s862 + $0x80] sm:$0xff] %v909
        %940 = vst [vmem:[%s862 + $0x88] sm:$0xff] %v910
        %941 = vst [vmem:[%s862 + $0x90] sm:$0xff] %v911
        %942 = vst [vmem:[%s862 + $0x98] sm:$0xff] %v912
        %943 = vst [vmem:[%s862 + $0xa0] sm:$0xff] %v913
        %944 = vst [vmem:[%s862 + $0xa8] sm:$0xff] %v914
        %945 = vst [vmem:[%s862 + $0xb0] sm:$0xff] %v915
        %946 = vst [vmem:[%s862 + $0xb8] sm:$0xff] %v916
        %947 = vst [vmem:[%s862 + $0xc0] sm:$0xff] %v917
        %948 = vst [vmem:[%s862 + $0xc8] sm:$0xff] %v918
        %949 = vst [vmem:[%s862 + $0xd0] sm:$0xff] %v919
        %950 = vst [vmem:[%s862 + $0xd8] sm:$0xff] %v920
        %951 = vst [vmem:[%s862 + $0xe0] sm:$0xff] %v921
        %952 = vst [vmem:[%s862 + $0xe8] sm:$0xff] %v922
        %v953 = vperm.slane %v312, 0
        %v954 = vmul.f32 %v385, %v953
        %v955 = vmul.f32 %v386, %v953
        %v956 = vmul.f32 %v387, %v953
        %v957 = vmul.f32 %v388, %v953
        %v958 = vmul.f32 %v389, %v953
        %v959 = vmul.f32 %v390, %v953
        %v960 = vmul.f32 %v391, %v953
        %v961 = vmul.f32 %v392, %v953
        %v962 = vmul.f32 %v393, %v953
        %v963 = vmul.f32 %v394, %v953
        %v964 = vmul.f32 %v395, %v953
        %v965 = vmul.f32 %v396, %v953
        %v966 = vmul.f32 %v397, %v953
        %v967 = vmul.f32 %v398, %v953
        %v968 = vmul.f32 %v399, %v953
        %v969 = vmul.f32 %v400, %v953
        %v970 = vmul.f32 %v401, %v953
        %v971 = vmul.f32 %v402, %v953
        %v972 = vmul.f32 %v403, %v953
        %v973 = vmul.f32 %v404, %v953
        %v974 = vmul.f32 %v405, %v953
        %v975 = vmul.f32 %v406, %v953
        %v976 = vmul.f32 %v407, %v953
        %v977 = vmul.f32 %v408, %v953
        %v978 = vmul.f32 %v409, %v953
        %v979 = vmul.f32 %v410, %v953
        %v980 = vmul.f32 %v411, %v953
        %v981 = vmul.f32 %v412, %v953
        %v982 = vmul.f32 %v413, %v953
        %v983 = vmul.f32 %v414, %v953
        %v984 = vperm.slane %v312, 1
        %v985 = vmul.f32 %v280, %v984
        %v986 = vmul.f32 %v281, %v984
        %v987 = vmul.f32 %v282, %v984
        %v988 = vmul.f32 %v283, %v984
        %v989 = vmul.f32 %v284, %v984
        %v990 = vmul.f32 %v285, %v984
        %v991 = vmul.f32 %v286, %v984
        %v992 = vmul.f32 %v287, %v984
        %v993 = vmul.f32 %v288, %v984
        %v994 = vmul.f32 %v289, %v984
        %v995 = vmul.f32 %v290, %v984
        %v996 = vmul.f32 %v291, %v984
        %v997 = vmul.f32 %v292, %v984
        %v998 = vmul.f32 %v293, %v984
        %v999 = vmul.f32 %v294, %v984
        %v1000 = vmul.f32 %v295, %v984
        %v1001 = vmul.f32 %v296, %v984
        %v1002 = vmul.f32 %v297, %v984
        %v1003 = vmul.f32 %v298, %v984
        %v1004 = vmul.f32 %v299, %v984
        %v1005 = vmul.f32 %v300, %v984
        %v1006 = vmul.f32 %v301, %v984
        %v1007 = vmul.f32 %v302, %v984
        %v1008 = vmul.f32 %v303, %v984
        %v1009 = vmul.f32 %v304, %v984
        %v1010 = vmul.f32 %v305, %v984
        %v1011 = vmul.f32 %v306, %v984
        %v1012 = vmul.f32 %v307, %v984
        %v1013 = vmul.f32 %v308, %v984
        %v1014 = vmul.f32 %v309, %v984
        %v1015 = vadd.f32 %v954, %v985
        %v1016 = vadd.f32 %v955, %v986
        %v1017 = vadd.f32 %v956, %v987
        %v1018 = vadd.f32 %v957, %v988
        %v1019 = vadd.f32 %v958, %v989
        %v1020 = vadd.f32 %v959, %v990
        %v1021 = vadd.f32 %v960, %v991
        %v1022 = vadd.f32 %v961, %v992
        %v1023 = vadd.f32 %v962, %v993
        %v1024 = vadd.f32 %v963, %v994
        %v1025 = vadd.f32 %v964, %v995
        %v1026 = vadd.f32 %v965, %v996
        %v1027 = vadd.f32 %v966, %v997
        %v1028 = vadd.f32 %v967, %v998
        %v1029 = vadd.f32 %v968, %v999
        %v1030 = vadd.f32 %v969, %v1000
        %v1031 = vadd.f32 %v970, %v1001
        %v1032 = vadd.f32 %v971, %v1002
        %v1033 = vadd.f32 %v972, %v1003
        %v1034 = vadd.f32 %v973, %v1004
        %v1035 = vadd.f32 %v974, %v1005
        %v1036 = vadd.f32 %v975, %v1006
        %v1037 = vadd.f32 %v976, %v1007
        %v1038 = vadd.f32 %v977, %v1008
        %v1039 = vadd.f32 %v978, %v1009
        %v1040 = vadd.f32 %v979, %v1010
        %v1041 = vadd.f32 %v980, %v1011
        %v1042 = vadd.f32 %v981, %v1012
        %v1043 = vadd.f32 %v982, %v1013
        %v1044 = vadd.f32 %v983, %v1014
        %v1045 = vperm.slane %v312, 2
        %v1046 = vmul.f32 %v484, %v1045
        %v1047 = vmul.f32 %v485, %v1045
        %v1048 = vmul.f32 %v486, %v1045
        %v1049 = vmul.f32 %v487, %v1045
        %v1050 = vmul.f32 %v488, %v1045
        %v1051 = vmul.f32 %v489, %v1045
        %v1052 = vmul.f32 %v490, %v1045
        %v1053 = vmul.f32 %v491, %v1045
        %v1054 = vmul.f32 %v492, %v1045
        %v1055 = vmul.f32 %v493, %v1045
        %v1056 = vmul.f32 %v494, %v1045
        %v1057 = vmul.f32 %v495, %v1045
        %v1058 = vmul.f32 %v496, %v1045
        %v1059 = vmul.f32 %v497, %v1045
        %v1060 = vmul.f32 %v498, %v1045
        %v1061 = vmul.f32 %v499, %v1045
        %v1062 = vmul.f32 %v500, %v1045
        %v1063 = vmul.f32 %v501, %v1045
        %v1064 = vmul.f32 %v502, %v1045
        %v1065 = vmul.f32 %v503, %v1045
        %v1066 = vmul.f32 %v504, %v1045
        %v1067 = vmul.f32 %v505, %v1045
        %v1068 = vmul.f32 %v506, %v1045
        %v1069 = vmul.f32 %v507, %v1045
        %v1070 = vmul.f32 %v508, %v1045
        %v1071 = vmul.f32 %v509, %v1045
        %v1072 = vmul.f32 %v510, %v1045
        %v1073 = vmul.f32 %v511, %v1045
        %v1074 = vmul.f32 %v512, %v1045
        %v1075 = vmul.f32 %v513, %v1045
        %v1076 = vadd.f32 %v1015, %v1046
        %v1077 = vadd.f32 %v1016, %v1047
        %v1078 = vadd.f32 %v1017, %v1048
        %v1079 = vadd.f32 %v1018, %v1049
        %v1080 = vadd.f32 %v1019, %v1050
        %v1081 = vadd.f32 %v1020, %v1051
        %v1082 = vadd.f32 %v1021, %v1052
        %v1083 = vadd.f32 %v1022, %v1053
        %v1084 = vadd.f32 %v1023, %v1054
        %v1085 = vadd.f32 %v1024, %v1055
        %v1086 = vadd.f32 %v1025, %v1056
        %v1087 = vadd.f32 %v1026, %v1057
        %v1088 = vadd.f32 %v1027, %v1058
        %v1089 = vadd.f32 %v1028, %v1059
        %v1090 = vadd.f32 %v1029, %v1060
        %v1091 = vadd.f32 %v1030, %v1061
        %v1092 = vadd.f32 %v1031, %v1062
        %v1093 = vadd.f32 %v1032, %v1063
        %v1094 = vadd.f32 %v1033, %v1064
        %v1095 = vadd.f32 %v1034, %v1065
        %v1096 = vadd.f32 %v1035, %v1066
        %v1097 = vadd.f32 %v1036, %v1067
        %v1098 = vadd.f32 %v1037, %v1068
        %v1099 = vadd.f32 %v1038, %v1069
        %v1100 = vadd.f32 %v1039, %v1070
        %v1101 = vadd.f32 %v1040, %v1071
        %v1102 = vadd.f32 %v1041, %v1072
        %v1103 = vadd.f32 %v1042, %v1073
        %v1104 = vadd.f32 %v1043, %v1074
        %v1105 = vadd.f32 %v1044, %v1075
        %v1106 = vld [vmem:[#allocation2] sm:$0xff]
        %v1107 = vld [vmem:[#allocation2 + $0x8] sm:$0xff]
        %v1108 = vld [vmem:[#allocation2 + $0x10] sm:$0xff]
        %v1109 = vld [vmem:[#allocation2 + $0x18] sm:$0xff]
        %v1110 = vld [vmem:[#allocation2 + $0x20] sm:$0xff]
        %v1111 = vld [vmem:[#allocation2 + $0x28] sm:$0xff]
        %v1112 = vld [vmem:[#allocation2 + $0x30] sm:$0xff]
        %v1113 = vld [vmem:[#allocation2 + $0x38] sm:$0xff]
        %v1114 = vld [vmem:[#allocation2 + $0x40] sm:$0xff]
        %v1115 = vld [vmem:[#allocation2 + $0x48] sm:$0xff]
        %v1116 = vld [vmem:[#allocation2 + $0x50] sm:$0xff]
        %v1117 = vld [vmem:[#allocation2 + $0x58] sm:$0xff]
        %v1118 = vld [vmem:[#allocation2 + $0x60] sm:$0xff]
        %v1119 = vld [vmem:[#allocation2 + $0x68] sm:$0xff]
        %v1120 = vld [vmem:[#allocation2 + $0x70] sm:$0xff]
        %v1121 = vld [vmem:[#allocation2 + $0x78] sm:$0xff]
        %v1122 = vld [vmem:[#allocation2 + $0x80] sm:$0xff]
        %v1123 = vld [vmem:[#allocation2 + $0x88] sm:$0xff]
        %v1124 = vld [vmem:[#allocation2 + $0x90] sm:$0xff]
        %v1125 = vld [vmem:[#allocation2 + $0x98] sm:$0xff]
        %v1126 = vld [vmem:[#allocation2 + $0xa0] sm:$0xff]
        %v1127 = vld [vmem:[#allocation2 + $0xa8] sm:$0xff]
        %v1128 = vld [vmem:[#allocation2 + $0xb0] sm:$0xff]
        %v1129 = vld [vmem:[#allocation2 + $0xb8] sm:$0xff]
        %v1130 = vld [vmem:[#allocation2 + $0xc0] sm:$0xff]
        %v1131 = vld [vmem:[#allocation2 + $0xc8] sm:$0xff]
        %v1132 = vld [vmem:[#allocation2 + $0xd0] sm:$0xff]
        %v1133 = vld [vmem:[#allocation2 + $0xd8] sm:$0xff]
        %v1134 = vld [vmem:[#allocation2 + $0xe0] sm:$0xff]
        %v1135 = vld [vmem:[#allocation2 + $0xe8] sm:$0xff]
        %v1136 = vadd.f32 %v1106, %v1076
        %v1137 = vadd.f32 %v1107, %v1077
        %v1138 = vadd.f32 %v1108, %v1078
        %v1139 = vadd.f32 %v1109, %v1079
        %v1140 = vadd.f32 %v1110, %v1080
        %v1141 = vadd.f32 %v1111, %v1081
        %v1142 = vadd.f32 %v1112, %v1082
        %v1143 = vadd.f32 %v1113, %v1083
        %v1144 = vadd.f32 %v1114, %v1084
        %v1145 = vadd.f32 %v1115, %v1085
        %v1146 = vadd.f32 %v1116, %v1086
        %v1147 = vadd.f32 %v1117, %v1087
        %v1148 = vadd.f32 %v1118, %v1088
        %v1149 = vadd.f32 %v1119, %v1089
        %v1150 = vadd.f32 %v1120, %v1090
        %v1151 = vadd.f32 %v1121, %v1091
        %v1152 = vadd.f32 %v1122, %v1092
        %v1153 = vadd.f32 %v1123, %v1093
        %v1154 = vadd.f32 %v1124, %v1094
        %v1155 = vadd.f32 %v1125, %v1095
        %v1156 = vadd.f32 %v1126, %v1096
        %v1157 = vadd.f32 %v1127, %v1097
        %v1158 = vadd.f32 %v1128, %v1098
        %v1159 = vadd.f32 %v1129, %v1099
        %v1160 = vadd.f32 %v1130, %v1100
        %v1161 = vadd.f32 %v1131, %v1101
        %v1162 = vadd.f32 %v1132, %v1102
        %v1163 = vadd.f32 %v1133, %v1103
        %v1164 = vadd.f32 %v1134, %v1104
        %v1165 = vadd.f32 %v1135, %v1105
        %1166 = vst [vmem:[#allocation2] sm:$0xff] %v1136
        %1167 = vst [vmem:[#allocation2 + $0x8] sm:$0xff] %v1137
        %1168 = vst [vmem:[#allocation2 + $0x10] sm:$0xff] %v1138
        %1169 = vst [vmem:[#allocation2 + $0x18] sm:$0xff] %v1139
        %1170 = vst [vmem:[#allocation2 + $0x20] sm:$0xff] %v1140
        %1171 = vst [vmem:[#allocation2 + $0x28] sm:$0xff] %v1141
        %1172 = vst [vmem:[#allocation2 + $0x30] sm:$0xff] %v1142
        %1173 = vst [vmem:[#allocation2 + $0x38] sm:$0xff] %v1143
        %1174 = vst [vmem:[#allocation2 + $0x40] sm:$0xff] %v1144
        %1175 = vst [vmem:[#allocation2 + $0x48] sm:$0xff] %v1145
        %1176 = vst [vmem:[#allocation2 + $0x50] sm:$0xff] %v1146
        %1177 = vst [vmem:[#allocation2 + $0x58] sm:$0xff] %v1147
        %1178 = vst [vmem:[#allocation2 + $0x60] sm:$0xff] %v1148
        %1179 = vst [vmem:[#allocation2 + $0x68] sm:$0xff] %v1149
        %1180 = vst [vmem:[#allocation2 + $0x70] sm:$0xff] %v1150
        %1181 = vst [vmem:[#allocation2 + $0x78] sm:$0xff] %v1151
        %1182 = vst [vmem:[#allocation2 + $0x80] sm:$0xff] %v1152
        %1183 = vst [vmem:[#allocation2 + $0x88] sm:$0xff] %v1153
        %1184 = vst [vmem:[#allocation2 + $0x90] sm:$0xff] %v1154
        %1185 = vst [vmem:[#allocation2 + $0x98] sm:$0xff] %v1155
        %1186 = vst [vmem:[#allocation2 + $0xa0] sm:$0xff] %v1156
        %1187 = vst [vmem:[#allocation2 + $0xa8] sm:$0xff] %v1157
        %1188 = vst [vmem:[#allocation2 + $0xb0] sm:$0xff] %v1158
        %1189 = vst [vmem:[#allocation2 + $0xb8] sm:$0xff] %v1159
        %1190 = vst [vmem:[#allocation2 + $0xc0] sm:$0xff] %v1160
        %1191 = vst [vmem:[#allocation2 + $0xc8] sm:$0xff] %v1161
        %1192 = vst [vmem:[#allocation2 + $0xd0] sm:$0xff] %v1162
        %1193 = vst [vmem:[#allocation2 + $0xd8] sm:$0xff] %v1163
        %1194 = vst [vmem:[#allocation2 + $0xe0] sm:$0xff] %v1164
        %1195 = vst [vmem:[#allocation2 + $0xe8] sm:$0xff] %v1165
        %v1196 = vld [vmem:[#allocation2] sm:$0xff]
        %v1197 = vld [vmem:[#allocation2 + $0x8] sm:$0xff]
        %v1198 = vld [vmem:[#allocation2 + $0x10] sm:$0xff]
        %v1199 = vld [vmem:[#allocation2 + $0x18] sm:$0xff]
        %v1200 = vld [vmem:[#allocation2 + $0x20] sm:$0xff]
        %v1201 = vld [vmem:[#allocation2 + $0x28] sm:$0xff]
        %v1202 = vld [vmem:[#allocation2 + $0x30] sm:$0xff]
        %v1203 = vld [vmem:[#allocation2 + $0x38] sm:$0xff]
        %v1204 = vld [vmem:[#allocation2 + $0x40] sm:$0xff]
        %v1205 = vld [vmem:[#allocation2 + $0x48] sm:$0xff]
        %v1206 = vld [vmem:[#allocation2 + $0x50] sm:$0xff]
        %v1207 = vld [vmem:[#allocation2 + $0x58] sm:$0xff]
        %v1208 = vld [vmem:[#allocation2 + $0x60] sm:$0xff]
        %v1209 = vld [vmem:[#allocation2 + $0x68] sm:$0xff]
        %v1210 = vld [vmem:[#allocation2 + $0x70] sm:$0xff]
        %v1211 = vld [vmem:[#allocation2 + $0x78] sm:$0xff]
        %v1212 = vld [vmem:[#allocation2 + $0x80] sm:$0xff]
        %v1213 = vld [vmem:[#allocation2 + $0x88] sm:$0xff]
        %v1214 = vld [vmem:[#allocation2 + $0x90] sm:$0xff]
        %v1215 = vld [vmem:[#allocation2 + $0x98] sm:$0xff]
        %v1216 = vld [vmem:[#allocation2 + $0xa0] sm:$0xff]
        %v1217 = vld [vmem:[#allocation2 + $0xa8] sm:$0xff]
        %v1218 = vld [vmem:[#allocation2 + $0xb0] sm:$0xff]
        %v1219 = vld [vmem:[#allocation2 + $0xb8] sm:$0xff]
        %v1220 = vld [vmem:[#allocation2 + $0xc0] sm:$0xff]
        %v1221 = vld [vmem:[#allocation2 + $0xc8] sm:$0xff]
        %v1222 = vld [vmem:[#allocation2 + $0xd0] sm:$0xff]
        %v1223 = vld [vmem:[#allocation2 + $0xd8] sm:$0xff]
        %v1224 = vld [vmem:[#allocation2 + $0xe0] sm:$0xff]
        %v1225 = vld [vmem:[#allocation2 + $0xe8] sm:$0xff]
        %v1226 = vld [vmem:[#allocation2 + $0xf0] sm:$0xff]
        %v1227 = vld [vmem:[#allocation2 + $0xf8] sm:$0xff]
        %v1228 = vld [vmem:[%s2] sm:$0x1]
        %v1230 = vperm.slane %v1228, 0
        %v1232 = vadd.f32 %v1196, %v1230
        %v1233 = vadd.f32 %v1197, %v1230
        %v1234 = vadd.f32 %v1198, %v1230
        %v1235 = vadd.f32 %v1199, %v1230
        %v1236 = vadd.f32 %v1200, %v1230
        %v1237 = vadd.f32 %v1201, %v1230
        %v1238 = vadd.f32 %v1202, %v1230
        %v1239 = vadd.f32 %v1203, %v1230
        %v1240 = vadd.f32 %v1204, %v1230
        %v1241 = vadd.f32 %v1205, %v1230
        %v1242 = vadd.f32 %v1206, %v1230
        %v1243 = vadd.f32 %v1207, %v1230
        %v1244 = vadd.f32 %v1208, %v1230
        %v1245 = vadd.f32 %v1209, %v1230
        %v1246 = vadd.f32 %v1210, %v1230
        %v1247 = vadd.f32 %v1211, %v1230
        %v1248 = vadd.f32 %v1212, %v1230
        %v1249 = vadd.f32 %v1213, %v1230
        %v1250 = vadd.f32 %v1214, %v1230
        %v1251 = vadd.f32 %v1215, %v1230
        %v1252 = vadd.f32 %v1216, %v1230
        %v1253 = vadd.f32 %v1217, %v1230
        %v1254 = vadd.f32 %v1218, %v1230
        %v1255 = vadd.f32 %v1219, %v1230
        %v1256 = vadd.f32 %v1220, %v1230
        %v1257 = vadd.f32 %v1221, %v1230
        %v1258 = vadd.f32 %v1222, %v1230
        %v1259 = vadd.f32 %v1223, %v1230
        %v1260 = vadd.f32 %v1224, %v1230
        %v1261 = vadd.f32 %v1225, %v1230
        %v1262 = vadd.f32 %v1226, %v1230
        %v1263 = vadd.f32 %v1227, %v1230
        %v1264 = vmax.f32 %v1232, 0.0
        %v1265 = vmax.f32 %v1233, 0.0
        %v1266 = vmax.f32 %v1234, 0.0
        %v1267 = vmax.f32 %v1235, 0.0
        %v1268 = vmax.f32 %v1236, 0.0
        %v1269 = vmax.f32 %v1237, 0.0
        %v1270 = vmax.f32 %v1238, 0.0
        %v1271 = vmax.f32 %v1239, 0.0
        %v1272 = vmax.f32 %v1240, 0.0
        %v1273 = vmax.f32 %v1241, 0.0
        %v1274 = vmax.f32 %v1242, 0.0
        %v1275 = vmax.f32 %v1243, 0.0
        %v1276 = vmax.f32 %v1244, 0.0
        %v1277 = vmax.f32 %v1245, 0.0
        %v1278 = vmax.f32 %v1246, 0.0
        %v1279 = vmax.f32 %v1247, 0.0
        %v1280 = vmax.f32 %v1248, 0.0
        %v1281 = vmax.f32 %v1249, 0.0
        %v1282 = vmax.f32 %v1250, 0.0
        %v1283 = vmax.f32 %v1251, 0.0
        %v1284 = vmax.f32 %v1252, 0.0
        %v1285 = vmax.f32 %v1253, 0.0
        %v1286 = vmax.f32 %v1254, 0.0
        %v1287 = vmax.f32 %v1255, 0.0
        %v1288 = vmax.f32 %v1256, 0.0
        %v1289 = vmax.f32 %v1257, 0.0
        %v1290 = vmax.f32 %v1258, 0.0
        %v1291 = vmax.f32 %v1259, 0.0
        %v1292 = vmax.f32 %v1260, 0.0
        %v1293 = vmax.f32 %v1261, 0.0
        %v1294 = vmax.f32 %v1262, 0.0
        %v1295 = vmax.f32 %v1263, 0.0
        %v1296 = vpack.c.bf16 %v1265, %v1264
        %v1297 = vpack.c.bf16 %v1267, %v1266
        %v1298 = vpack.c.bf16 %v1269, %v1268
        %v1299 = vpack.c.bf16 %v1271, %v1270
        %v1300 = vpack.c.bf16 %v1273, %v1272
        %v1301 = vpack.c.bf16 %v1275, %v1274
        %v1302 = vpack.c.bf16 %v1277, %v1276
        %v1303 = vpack.c.bf16 %v1279, %v1278
        %v1304 = vpack.c.bf16 %v1281, %v1280
        %v1305 = vpack.c.bf16 %v1283, %v1282
        %v1306 = vpack.c.bf16 %v1285, %v1284
        %v1307 = vpack.c.bf16 %v1287, %v1286
        %v1308 = vpack.c.bf16 %v1289, %v1288
        %v1309 = vpack.c.bf16 %v1291, %v1290
        %v1310 = vpack.c.bf16 %v1293, %v1292
        %v1311 = vpack.c.bf16 %v1295, %v1294
        %v1312 = vld [vmem:[#allocation8] sm:$0xf]
        %v1313 = vld [vmem:[#allocation8 + $0x4] sm:$0xf]
        %v1314 = vld [vmem:[#allocation8 + $0x8] sm:$0xf]
        %v1315 = vld [vmem:[#allocation8 + $0xc] sm:$0xf]
        %v1316 = vld [vmem:[#allocation8 + $0x10] sm:$0xf]
        %v1317 = vld [vmem:[#allocation8 + $0x14] sm:$0xf]
        %v1318 = vld [vmem:[#allocation8 + $0x18] sm:$0xf]
        %v1319 = vld [vmem:[#allocation8 + $0x1c] sm:$0xf]
        %v1320 = vld [vmem:[#allocation8 + $0x20] sm:$0xf]
        %v1321 = vld [vmem:[#allocation8 + $0x24] sm:$0xf]
        %v1322 = vld [vmem:[#allocation8 + $0x28] sm:$0xf]
        %v1323 = vld [vmem:[#allocation8 + $0x2c] sm:$0xf]
        %v1324 = vld [vmem:[#allocation8 + $0x30] sm:$0xf]
        %v1325 = vld [vmem:[#allocation8 + $0x34] sm:$0xf]
        %v1326 = vld [vmem:[#allocation8 + $0x38] sm:$0xf]
        %v1327 = vld [vmem:[#allocation8 + $0x3c] sm:$0xf]
        %v1328 = vld [vmem:[%s4] sm:$0x1]
        %v1330 = vperm.slane %v1328, 0
        %v1348 = vunpack.c.l.b16 %v1312
        %v1349 = vunpack.c.l.b16 %v1313
        %v1350 = vunpack.c.l.b16 %v1314
        %v1351 = vunpack.c.l.b16 %v1315
        %v1352 = vunpack.c.l.b16 %v1316
        %v1353 = vunpack.c.l.b16 %v1317
        %v1354 = vunpack.c.l.b16 %v1318
        %v1355 = vunpack.c.l.b16 %v1319
        %v1356 = vunpack.c.l.b16 %v1320
        %v1357 = vunpack.c.l.b16 %v1321
        %v1358 = vunpack.c.l.b16 %v1322
        %v1359 = vunpack.c.l.b16 %v1323
        %v1360 = vunpack.c.l.b16 %v1324
        %v1361 = vunpack.c.l.b16 %v1325
        %v1362 = vunpack.c.l.b16 %v1326
        %v1363 = vunpack.c.l.b16 %v1327
        %v1364 = vpack.c.b16 %v1349, %v1348
        %v1365 = vpack.c.b16 %v1351, %v1350
        %v1366 = vpack.c.b16 %v1353, %v1352
        %v1367 = vpack.c.b16 %v1355, %v1354
        %v1368 = vpack.c.b16 %v1357, %v1356
        %v1369 = vpack.c.b16 %v1359, %v1358
        %v1370 = vpack.c.b16 %v1361, %v1360
        %v1371 = vpack.c.b16 %v1363, %v1362
        %1380 = vmatpush.bf16.msra.mxu0 %v1371
        %1381 = vmatpush.bf16.msra.mxu0 %v1370
        %1382 = vmatpush.bf16.msra.mxu0 %v1369
        %1383 = vmatpush.bf16.msra.mxu0 %v1368
        %1384 = vmatpush.bf16.msra.mxu0 %v1367
        %1385 = vmatpush.bf16.msra.mxu0 %v1366
        %1386 = vmatpush.bf16.msra.mxu0 %v1365
        %1387 = vmatpush.bf16.msra.mxu0 %v1364
        %1388 = vmatmul.bf16.gmra.mxu0 %v1296
        %v1389 = vpop.f32.mrf.mxu0
        %v1390 = vadd.f32 %v1330, %v1389
        %v1391 = vpop.f32.mrf.mxu0
        %v1392 = vadd.f32 %v1330, %v1391
        %1393 = vmatmul.bf16.gmra.mxu0 %v1297
        %v1394 = vpop.f32.mrf.mxu0
        %v1395 = vadd.f32 %v1330, %v1394
        %v1396 = vpop.f32.mrf.mxu0
        %v1397 = vadd.f32 %v1330, %v1396
        %1398 = vmatmul.bf16.gmra.mxu0 %v1298
        %v1399 = vpop.f32.mrf.mxu0
        %v1400 = vadd.f32 %v1330, %v1399
        %v1401 = vpop.f32.mrf.mxu0
        %v1402 = vadd.f32 %v1330, %v1401
        %1403 = vmatmul.bf16.gmra.mxu0 %v1299
        %v1404 = vpop.f32.mrf.mxu0
        %v1405 = vadd.f32 %v1330, %v1404
        %v1406 = vpop.f32.mrf.mxu0
        %v1407 = vadd.f32 %v1330, %v1406
        %1408 = vmatmul.bf16.gmra.mxu0 %v1300
        %v1409 = vpop.f32.mrf.mxu0
        %v1410 = vadd.f32 %v1330, %v1409
        %v1411 = vpop.f32.mrf.mxu0
        %v1412 = vadd.f32 %v1330, %v1411
        %1413 = vmatmul.bf16.gmra.mxu0 %v1301
        %v1414 = vpop.f32.mrf.mxu0
        %v1415 = vadd.f32 %v1330, %v1414
        %v1416 = vpop.f32.mrf.mxu0
        %v1417 = vadd.f32 %v1330, %v1416
        %1418 = vmatmul.bf16.gmra.mxu0 %v1302
        %v1419 = vpop.f32.mrf.mxu0
        %v1420 = vadd.f32 %v1330, %v1419
        %v1421 = vpop.f32.mrf.mxu0
        %v1422 = vadd.f32 %v1330, %v1421
        %1423 = vmatmul.bf16.gmra.mxu0 %v1303
        %v1424 = vpop.f32.mrf.mxu0
        %v1425 = vadd.f32 %v1330, %v1424
        %v1426 = vpop.f32.mrf.mxu0
        %v1427 = vadd.f32 %v1330, %v1426
        %1428 = vmatmul.bf16.gmra.mxu0 %v1304
        %v1429 = vpop.f32.mrf.mxu0
        %v1430 = vadd.f32 %v1330, %v1429
        %v1431 = vpop.f32.mrf.mxu0
        %v1432 = vadd.f32 %v1330, %v1431
        %1433 = vmatmul.bf16.gmra.mxu0 %v1305
        %v1434 = vpop.f32.mrf.mxu0
        %v1435 = vadd.f32 %v1330, %v1434
        %v1436 = vpop.f32.mrf.mxu0
        %v1437 = vadd.f32 %v1330, %v1436
        %1438 = vmatmul.bf16.gmra.mxu0 %v1306
        %v1439 = vpop.f32.mrf.mxu0
        %v1440 = vadd.f32 %v1330, %v1439
        %v1441 = vpop.f32.mrf.mxu0
        %v1442 = vadd.f32 %v1330, %v1441
        %1443 = vmatmul.bf16.gmra.mxu0 %v1307
        %v1444 = vpop.f32.mrf.mxu0
        %v1445 = vadd.f32 %v1330, %v1444
        %v1446 = vpop.f32.mrf.mxu0
        %v1447 = vadd.f32 %v1330, %v1446
        %1448 = vmatmul.bf16.gmra.mxu0 %v1308
        %v1449 = vpop.f32.mrf.mxu0
        %v1450 = vadd.f32 %v1330, %v1449
        %v1451 = vpop.f32.mrf.mxu0
        %v1452 = vadd.f32 %v1330, %v1451
        %1453 = vmatmul.bf16.gmra.mxu0 %v1309
        %v1454 = vpop.f32.mrf.mxu0
        %v1455 = vadd.f32 %v1330, %v1454
        %v1456 = vpop.f32.mrf.mxu0
        %v1457 = vadd.f32 %v1330, %v1456
        %1458 = vmatmul.bf16.gmra.mxu0 %v1310
        %v1459 = vpop.f32.mrf.mxu0
        %v1460 = vadd.f32 %v1330, %v1459
        %v1461 = vpop.f32.mrf.mxu0
        %v1462 = vadd.f32 %v1330, %v1461
        %1463 = vmatmul.bf16.gmra.mxu0 %v1311
        %v1464 = vpop.f32.mrf.mxu0
        %v1465 = vadd.f32 %v1330, %v1464
        %v1466 = vpop.f32.mrf.mxu0
        %v1467 = vadd.f32 %v1330, %v1466
        %1468 = vdwg.mxu0
        %v1469 = vmax.f32 %v1390, 0.0
        %v1470 = vmax.f32 %v1392, 0.0
        %v1471 = vmax.f32 %v1395, 0.0
        %v1472 = vmax.f32 %v1397, 0.0
        %v1473 = vmax.f32 %v1400, 0.0
        %v1474 = vmax.f32 %v1402, 0.0
        %v1475 = vmax.f32 %v1405, 0.0
        %v1476 = vmax.f32 %v1407, 0.0
        %v1477 = vmax.f32 %v1410, 0.0
        %v1478 = vmax.f32 %v1412, 0.0
        %v1479 = vmax.f32 %v1415, 0.0
        %v1480 = vmax.f32 %v1417, 0.0
        %v1481 = vmax.f32 %v1420, 0.0
        %v1482 = vmax.f32 %v1422, 0.0
        %v1483 = vmax.f32 %v1425, 0.0
        %v1484 = vmax.f32 %v1427, 0.0
        %v1485 = vmax.f32 %v1430, 0.0
        %v1486 = vmax.f32 %v1432, 0.0
        %v1487 = vmax.f32 %v1435, 0.0
        %v1488 = vmax.f32 %v1437, 0.0
        %v1489 = vmax.f32 %v1440, 0.0
        %v1490 = vmax.f32 %v1442, 0.0
        %v1491 = vmax.f32 %v1445, 0.0
        %v1492 = vmax.f32 %v1447, 0.0
        %v1493 = vmax.f32 %v1450, 0.0
        %v1494 = vmax.f32 %v1452, 0.0
        %v1495 = vmax.f32 %v1455, 0.0
        %v1496 = vmax.f32 %v1457, 0.0
        %v1497 = vmax.f32 %v1460, 0.0
        %v1498 = vmax.f32 %v1462, 0.0
        %v1499 = vmax.f32 %v1465, 0.0
        %v1500 = vmax.f32 %v1467, 0.0
        %1501 = vst [vmem:[%s277] sm:$0xff] %v1469
        %1502 = vst [vmem:[%s277 + $0x8] sm:$0xff] %v1470
        %1503 = vst [vmem:[%s277 + $0x10] sm:$0xff] %v1471
        %1504 = vst [vmem:[%s277 + $0x18] sm:$0xff] %v1472
        %1505 = vst [vmem:[%s277 + $0x20] sm:$0xff] %v1473
        %1506 = vst [vmem:[%s277 + $0x28] sm:$0xff] %v1474
        %1507 = vst [vmem:[%s277 + $0x30] sm:$0xff] %v1475
        %1508 = vst [vmem:[%s277 + $0x38] sm:$0xff] %v1476
        %1509 = vst [vmem:[%s277 + $0x40] sm:$0xff] %v1477
        %1510 = vst [vmem:[%s277 + $0x48] sm:$0xff] %v1478
        %1511 = vst [vmem:[%s277 + $0x50] sm:$0xff] %v1479
        %1512 = vst [vmem:[%s277 + $0x58] sm:$0xff] %v1480
        %1513 = vst [vmem:[%s277 + $0x60] sm:$0xff] %v1481
        %1514 = vst [vmem:[%s277 + $0x68] sm:$0xff] %v1482
        %1515 = vst [vmem:[%s277 + $0x70] sm:$0xff] %v1483
        %1516 = vst [vmem:[%s277 + $0x78] sm:$0xff] %v1484
        %1517 = vst [vmem:[%s277 + $0x80] sm:$0xff] %v1485
        %1518 = vst [vmem:[%s277 + $0x88] sm:$0xff] %v1486
        %1519 = vst [vmem:[%s277 + $0x90] sm:$0xff] %v1487
        %1520 = vst [vmem:[%s277 + $0x98] sm:$0xff] %v1488
        %1521 = vst [vmem:[%s277 + $0xa0] sm:$0xff] %v1489
        %1522 = vst [vmem:[%s277 + $0xa8] sm:$0xff] %v1490
        %1523 = vst [vmem:[%s277 + $0xb0] sm:$0xff] %v1491
        %1524 = vst [vmem:[%s277 + $0xb8] sm:$0xff] %v1492
        %1525 = vst [vmem:[%s277 + $0xc0] sm:$0xff] %v1493
        %1526 = vst [vmem:[%s277 + $0xc8] sm:$0xff] %v1494
        %1527 = vst [vmem:[%s277 + $0xd0] sm:$0xff] %v1495
        %1528 = vst [vmem:[%s277 + $0xd8] sm:$0xff] %v1496
        %1529 = vst [vmem:[%s277 + $0xe0] sm:$0xff] %v1497
        %1530 = vst [vmem:[%s277 + $0xe8] sm:$0xff] %v1498
        %1531 = vst [vmem:[%s277 + $0xf0] sm:$0xff] %v1499
        %1532 = vst [vmem:[%s277 + $0xf8] sm:$0xff] %v1500
        %s1533 = sand.u32 %s141, 1
        %s1534 = scalar_lea.sflag [#allocation5], %s1533
        %s1535 = sand.u32 %s141, 1
        %s1536 = smul.addr %s1535, 256
        %s1537 = scalar_lea.vmem [#allocation9], %s1536
        // Predicated region
        $region53: #{tpu_custom_call.1} parent=39 // pred_check
          %p1538 = pneg %p151
        $region54: #{tpu_custom_call.1} parent=39 // pred_check_branch
          %1540 = sbr.rel (%p1538) target = $region56
        $region55: #{tpu_custom_call.1} parent=39 // pred_region
          %1542 = vsyncadd %s1534, 0
          %s1543 = smul.addr %s23, 32
          %s1544 = smul.addr %s1543, 8
          %s1545 = scalar_lea.hbm %s5, %s1544
          %s1546 = sshll.u32 %s1537, 4
          %s1547 = int_to_ptr.vmem [resolvable:$true] %s1546
          %s1548 = sshll.u32 %s1545, 4
          %s1549 = int_to_ptr.hbm [resolvable:$true] %s1548
          %1554 = dma.vmem_to_hbm [thread:$0]  %s1547, 4096, %s1549, %s1534, 128, 128, 8
        $region56: #{tpu_custom_call.1} parent=39 // pred_fallthru
          _
      $region40: #{tpu_custom_call.1} parent=5 // pred_fallthru
        _
      %p1555 = scmp.le.s32.totalorder 2, %s18
      // Predicated region
      $region57: #{tpu_custom_call.1} parent=5 // pred_check
        %p1556 = pneg %p1555
      $region58: #{tpu_custom_call.1} parent=5 // pred_check_branch
        %1558 = sbr.rel (%p1556) target = $region60
      $region59: #{tpu_custom_call.1} parent=5 // pred_region
        %s1559 = ssub.s32 %s18, 2
        // Predicated region
        $region61: #{tpu_custom_call.1} parent=59 // pred_check
          %p1560 = pneg %p157
        $region62: #{tpu_custom_call.1} parent=59 // pred_check_branch
          %1562 = sbr.rel (%p1560) target = $region64
        $region63: #{tpu_custom_call.1} parent=59 // pred_region
          %s1563 = sand.u32 %s142, 1
          %s1564 = scalar_lea.sflag [#allocation5], %s1563
          %s1565 = sand.u32 %s142, 1
          %s1566 = smul.addr %s1565, 256
          %s1567 = scalar_lea.vmem [#allocation9], %s1566
          %1569 = dma.done %s1564, 4096
        $region64: #{tpu_custom_call.1} parent=59 // pred_fallthru
          _
      $region60: #{tpu_custom_call.1} parent=5 // pred_fallthru
        _
    $region6: #{tpu_custom_call.1} parent=1 // loop_footer
      %s22 = sadd.s32 1, %s18
    $region7: #{tpu_custom_call.1} parent=1 // loop_footer_branch
      %17 = sbr.rel target = $region3
    $region8: #{tpu_custom_call.1} parent=1 // loop_exit
      _
    %1570 = vsyncpa [#allocation4], 1
    %s1571 = scalar_lea.sflag [#allocation4], 1
    %1572 = vsyncpa %s1571, 1
    %1573 = vsyncpa [#allocation7], 1
    %1574 = vsyncpa [#allocation5], 1
    %s1575 = scalar_lea.sflag [#allocation5], 1
    %1576 = vsyncpa %s1575, 1

</llo_original>
